<compile_context>
chip_gen: v7x
topology: tpu7x:2x2x1
jax: 0.10.0
libtpu: 0.0.40
codegen_flags: <defaults>
</compile_context>

<pallas_src>
import functools

import jax
import jax.numpy as jnp
import numpy as np
from jax.experimental import pallas as pl
from jax.experimental.pallas import tpu as pltpu


def _round_up(n, m):
    return ((n + m - 1) // m) * m


def _sage_kernel(adj_ref, xhi_ref, xlo_ref, whi_ref, wlo_ref, b_ref, o_ref, h_ref,
                 *, f_in_p, deg_lane):
    """Grid = (i: dst blocks, k: src blocks).

    adj_ref : [tile, tile]  int8 (0/1), [dst, src] layout
    xhi/xlo : [tile, f_in_p] bf16 exact hi/lo split of padded x (src rows);
              lane `deg_lane` of xhi is the constant 1.0 degree column.
    whi/wlo : [2*f_in_p, F_out_p] bf16 exact hi/lo split of stacked [w_l ; w_r]
    h_ref   : VMEM scratch [tile, 2*f_in_p] f32 holding [agg_accum | x_root]
    """
    i = pl.program_id(0)
    k = pl.program_id(1)

    @pl.when(k == 0)
    def _init():
        h_ref[...] = jnp.zeros_like(h_ref)

    # ---- aggregation on the MXU (bf16 passes, f32 accumulation) -------------
    # int8 -> f32 -> bf16 (0/1 is exact in bf16; chained cast uses only
    # conversions guaranteed by the Mosaic lowering).
    a = adj_ref[...].astype(jnp.float32).astype(jnp.bfloat16)
    agg = jnp.dot(a, xhi_ref[...], preferred_element_type=jnp.float32)
    agg = agg + jnp.dot(a, xlo_ref[...], preferred_element_type=jnp.float32)
    h_ref[:, 0:f_in_p] += agg          # degree accumulates in lane `deg_lane`

    # ---- root/self features: captured from the x stream on the diagonal block
    @pl.when(k == i)
    def _root():
        h_ref[:, f_in_p:2 * f_in_p] = (xhi_ref[...].astype(jnp.float32)
                                       + xlo_ref[...].astype(jnp.float32))

    # ---- finalize: mean, fused projection, bias, ReLU ------------------------
    @pl.when(k == pl.num_programs(1) - 1)
    def _finalize():
        agg_acc = h_ref[:, 0:f_in_p]
        # pull the in-degree out of its dedicated lane (finalize-only XLU work)
        lane = jax.lax.broadcasted_iota(jnp.int32, agg_acc.shape, 1)
        deg = jnp.sum(jnp.where(lane == deg_lane, agg_acc, 0.0),
                      axis=-1, keepdims=True)
        inv = jnp.where(deg > 0.0, 1.0 / jnp.maximum(deg, 1.0), 0.0)
        h_ref[:, 0:f_in_p] = agg_acc * inv

        # single fused projection [agg | x] @ [w_l ; w_r] as exact bf16-split
        # passes (hi@hi + hi@lo + lo@hi); padded weight rows are zero so the
        # degree lane / padded lanes never leak into the output.
        h = h_ref[...]
        h_hi = h.astype(jnp.bfloat16)
        h_lo = (h - h_hi.astype(jnp.float32)).astype(jnp.bfloat16)
        out = jnp.dot(h_hi, whi_ref[...], preferred_element_type=jnp.float32)
        out = out + jnp.dot(h_hi, wlo_ref[...], preferred_element_type=jnp.float32)
        out = out + jnp.dot(h_lo, whi_ref[...], preferred_element_type=jnp.float32)
        out = out + b_ref[...]
        o_ref[...] = jnp.maximum(out, 0.0).astype(o_ref.dtype)   # act = ReLU


def sage_layer(x, adj, w_l, w_r, bias, *, max_tile=1024):
    """x: [N, F_in]; adj: [N, N] with adj[src, dst] != 0 => edge src->dst;
    w_l, w_r: [F_in, F_out] (already transposed); bias: [1, F_out]."""
    N, F_in = x.shape
    F_out = w_l.shape[1]

    # Reserve one extra lane for the constant-1 degree column.
    F_in_p = _round_up(F_in + 1, 128)
    F_out_p = _round_up(F_out, 128)
    deg_lane = F_in

    N_128 = _round_up(N, 128)
    tile = min(max_tile, N_128)
    # Keep >= 2 dst blocks when the graph allows it so v7x's two TensorCores both
    # get work along the "parallel" i axis.
    if N_128 >= 256 and N_128 // tile < 2:
        tile = _round_up(N_128 // 2, 128)
    N_p = _round_up(N, tile)
    grid = (N_p // tile, N_p // tile)

    # Binarize once; [dst, src] layout; compact int8 in HBM.
    adj_ds = jnp.pad((adj != 0).astype(jnp.int8).T, ((0, N_p - N), (0, N_p - N)))

    # Padded x with constant-1 degree lane; exact bf16 hi/lo split.
    x_pad = jnp.zeros((N_p, F_in_p), jnp.float32)
    x_pad = x_pad.at[:N, :F_in].set(x.astype(jnp.float32))
    x_pad = x_pad.at[:, deg_lane].set(1.0)      # padded src rows are masked by adj=0
    x_hi = x_pad.astype(jnp.bfloat16)
    x_lo = (x_pad - x_hi.astype(jnp.float32)).astype(jnp.bfloat16)

    # Stacked projection weight [w_l ; w_r], zero-padded (exact), bf16 hi/lo split.
    w_cat = jnp.zeros((2 * F_in_p, F_out_p), jnp.float32)
    w_cat = w_cat.at[:F_in, :F_out].set(w_l.astype(jnp.float32))
    w_cat = w_cat.at[F_in_p:F_in_p + F_in, :F_out].set(w_r.astype(jnp.float32))
    w_hi = w_cat.astype(jnp.bfloat16)
    w_lo = (w_cat - w_hi.astype(jnp.float32)).astype(jnp.bfloat16)

    b_p = jnp.zeros((1, F_out_p), jnp.float32)
    b_p = b_p.at[:, :F_out].set(bias.astype(jnp.float32).reshape(1, F_out))

    kernel = functools.partial(_sage_kernel, f_in_p=F_in_p, deg_lane=deg_lane)

    out_p = pl.pallas_call(
        kernel,
        out_shape=jax.ShapeDtypeStruct((N_p, F_out_p), jnp.float32),
        grid_spec=pltpu.PrefetchScalarGridSpec(
            num_scalar_prefetch=0,
            grid=grid,
            in_specs=[
                pl.BlockSpec((tile, tile), lambda i, k: (i, k)),           # adj [dst, src]
                pl.BlockSpec((tile, F_in_p), lambda i, k: (k, 0)),         # x_hi (src rows)
                pl.BlockSpec((tile, F_in_p), lambda i, k: (k, 0)),         # x_lo (src rows)
                pl.BlockSpec((2 * F_in_p, F_out_p), lambda i, k: (0, 0)),  # w_hi
                pl.BlockSpec((2 * F_in_p, F_out_p), lambda i, k: (0, 0)),  # w_lo
                pl.BlockSpec((1, F_out_p), lambda i, k: (0, 0)),           # bias
            ],
            out_specs=pl.BlockSpec((tile, F_out_p), lambda i, k: (i, 0)),
            scratch_shapes=[
                pltpu.VMEM((tile, 2 * F_in_p), jnp.float32),   # [agg_accum | x_root]
            ],
        ),
        compiler_params=pltpu.CompilerParams(
            dimension_semantics=("parallel", "arbitrary"),
            vmem_limit_bytes=48 * 1024 * 1024,
        ),
    )(adj_ds, x_hi, x_lo, w_hi, w_lo, b_p)

    return out_p[:N, :F_out]


def xavier_uniform(key, fan_in, fan_out):
    # matches torch.nn.init.xavier_uniform_ (gain=1) for a [out, in] weight;
    # stored transposed as [in, out] so the kernel multiplies row-major.
    limit = (6.0 / (fan_in + fan_out)) ** 0.5
    return jax.random.uniform(key, (fan_in, fan_out), jnp.float32, -limit, limit)


def reference_numpy(x, adj, w_l, w_r, bias):
    """Host-side float64 reference (avoids TPU default matmul-precision fuzz)."""
    x64 = np.asarray(x, np.float64)
    a = (np.asarray(adj) != 0).astype(np.float64)
    deg = a.sum(axis=0)                                    # in-degree of targets
    agg = a.T @ x64
    agg = np.where(deg[:, None] > 0, agg / np.maximum(deg[:, None], 1.0), 0.0)
    out = (agg @ np.asarray(w_l, np.float64)
           + x64 @ np.asarray(w_r, np.float64)
           + np.asarray(bias, np.float64))
    return np.maximum(out, 0.0)


if __name__ == "__main__":
    N, F_in, F_out = 16, 32, 32
    key = jax.random.PRNGKey(0)
    k_x, k_adj, k_wl, k_wr, k_b = jax.random.split(key, 5)

    x = jax.random.normal(k_x, (N, F_in), jnp.float32)
    # random sparse-ish binary adjacency (no self-loops required)
    adj = (jax.random.uniform(k_adj, (N, N)) < 0.3).astype(jnp.float32)

    w_l = xavier_uniform(k_wl, F_in, F_out)
    w_r = xavier_uniform(k_wr, F_in, F_out)
    # lin_l bias: PyG Linear default init; deterministic small uniform here
    b_lim = 1.0 / (F_in ** 0.5)
    bias = jax.random.uniform(k_b, (1, F_out), jnp.float32, -b_lim, b_lim)

    out = jax.block_until_ready(sage_layer(x, adj, w_l, w_r, bias))
    ref = reference_numpy(x, adj, w_l, w_r, bias)

    assert out.shape == (N, F_out)
    err = float(np.max(np.abs(np.asarray(out, np.float64) - ref)))
    assert np.allclose(np.asarray(out), ref, atol=2e-4, rtol=2e-4), err
    print("KERNEL_OK")
</pallas_src>

<mosaic_0001>
module attributes {stable_mosaic.version = 11 : i64} {
  func.func @_sage_kernel(%arg0: i32, %arg1: i32, %arg2: memref<128x128xi8, #tpu.memory_space<vmem>>, %arg3: memref<128x128xbf16, #tpu.memory_space<vmem>>, %arg4: memref<128x128xbf16, #tpu.memory_space<vmem>>, %arg5: memref<256x128xbf16, #tpu.memory_space<vmem>>, %arg6: memref<256x128xbf16, #tpu.memory_space<vmem>>, %arg7: memref<1x128xf32, #tpu.memory_space<vmem>>, %arg8: memref<128x128xf32, #tpu.memory_space<vmem>>, %arg9: memref<128x256xf32, #tpu.memory_space<vmem>>) attributes {dimension_semantics = [#tpu.dimension_semantics<parallel>, #tpu.dimension_semantics<arbitrary>], iteration_bounds = array<i64: 1, 1>, scalar_prefetch = 0 : i64, scratch_operands = 1 : i64, tpu.core_type = #tpu.core_type<tc>, window_params = [{transform_indices = @transform_0, window_bounds = array<i64: 128, 128>}, {transform_indices = @transform_1, window_bounds = array<i64: 128, 128>}, {transform_indices = @transform_2, window_bounds = array<i64: 128, 128>}, {pipeline_mode = #tpu.pipeline_mode<synchronous>, transform_indices = @transform_3, window_bounds = array<i64: 256, 128>}, {pipeline_mode = #tpu.pipeline_mode<synchronous>, transform_indices = @transform_4, window_bounds = array<i64: 256, 128>}, {pipeline_mode = #tpu.pipeline_mode<synchronous>, transform_indices = @transform_5, window_bounds = array<i64: 1, 128>}, {transform_indices = @transform_6, window_bounds = array<i64: 128, 128>}]} {
    %c0_i32 = arith.constant 0 : i32
    %0 = arith.cmpi eq, %arg1, %c0_i32 : i32
    %1 = arith.extui %0 : i1 to i32
    %c0_i32_0 = arith.constant 0 : i32
    %2 = arith.cmpi ne, %1, %c0_i32_0 : i32
    scf.if %2 {
      %cst_14 = arith.constant 0.000000e+00 : f32
      %20 = vector.broadcast %cst_14 : f32 to vector<128x256xf32>
      %c0_15 = arith.constant 0 : index
      %c0_16 = arith.constant 0 : index
      %21 = vector.load %arg9[%c0_15, %c0_16] : memref<128x256xf32, #tpu.memory_space<vmem>>, vector<128x256xf32>
      tpu.vector_store %arg9[%c0_15, %c0_16], %20 {strides = array<i32>} : memref<128x256xf32, #tpu.memory_space<vmem>>, vector<128x256xf32>,
    } else {
    }
    %c0 = arith.constant 0 : index
    %c0_1 = arith.constant 0 : index
    %3 = vector.load %arg2[%c0, %c0_1] : memref<128x128xi8, #tpu.memory_space<vmem>>, vector<128x128xi8>
    %4 = arith.sitofp %3 : vector<128x128xi8> to vector<128x128xf32>
    %5 = arith.truncf %4 : vector<128x128xf32> to vector<128x128xbf16>
    %c0_2 = arith.constant 0 : index
    %c0_3 = arith.constant 0 : index
    %6 = vector.load %arg3[%c0_2, %c0_3] : memref<128x128xbf16, #tpu.memory_space<vmem>>, vector<128x128xbf16>
    %cst = arith.constant dense<0.000000e+00> : vector<128x128xf32>
    %7 = tpu.matmul %5, %6, %cst {dimension_numbers = #tpu.dot_dimension_numbers<[1], [0], [0], [1], [0, 0, 1, 1], [], []>} : vector<128x128xbf16>, vector<128x128xbf16>, vector<128x128xf32> -> vector<128x128xf32>
    %c0_4 = arith.constant 0 : index
    %c0_5 = arith.constant 0 : index
    %8 = vector.load %arg4[%c0_4, %c0_5] : memref<128x128xbf16, #tpu.memory_space<vmem>>, vector<128x128xbf16>
    %cst_6 = arith.constant dense<0.000000e+00> : vector<128x128xf32>
    %9 = tpu.matmul %5, %8, %cst_6 {dimension_numbers = #tpu.dot_dimension_numbers<[1], [0], [0], [1], [0, 0, 1, 1], [], []>} : vector<128x128xbf16>, vector<128x128xbf16>, vector<128x128xf32> -> vector<128x128xf32>
    %10 = arith.addf %7, %9 : vector<128x128xf32>
    %c0_7 = arith.constant 0 : index
    %c0_8 = arith.constant 0 : index
    %11 = vector.load %arg9[%c0_7, %c0_8] : memref<128x256xf32, #tpu.memory_space<vmem>>, vector<128x128xf32>
    %12 = arith.addf %11, %10 : vector<128x128xf32>
    %c0_9 = arith.constant 0 : index
    %c0_10 = arith.constant 0 : index
    %13 = vector.load %arg9[%c0_9, %c0_10] : memref<128x256xf32, #tpu.memory_space<vmem>>, vector<128x128xf32>
    tpu.vector_store %arg9[%c0_9, %c0_10], %12 {strides = array<i32>} : memref<128x256xf32, #tpu.memory_space<vmem>>, vector<128x128xf32>,
    %14 = arith.cmpi eq, %arg1, %arg0 : i32
    %15 = arith.extui %14 : i1 to i32
    %c0_i32_11 = arith.constant 0 : i32
    %16 = arith.cmpi ne, %15, %c0_i32_11 : i32
    scf.if %16 {
      %c0_14 = arith.constant 0 : index
      %c0_15 = arith.constant 0 : index
      %20 = vector.load %arg3[%c0_14, %c0_15] : memref<128x128xbf16, #tpu.memory_space<vmem>>, vector<128x128xbf16>
      %21 = arith.extf %20 : vector<128x128xbf16> to vector<128x128xf32>
      %c0_16 = arith.constant 0 : index
      %c0_17 = arith.constant 0 : index
      %22 = vector.load %arg4[%c0_16, %c0_17] : memref<128x128xbf16, #tpu.memory_space<vmem>>, vector<128x128xbf16>
      %23 = arith.extf %22 : vector<128x128xbf16> to vector<128x128xf32>
      %24 = arith.addf %21, %23 : vector<128x128xf32>
      %c0_18 = arith.constant 0 : index
      %c128 = arith.constant 128 : index
      %25 = vector.load %arg9[%c0_18, %c128] : memref<128x256xf32, #tpu.memory_space<vmem>>, vector<128x128xf32>
      tpu.vector_store %arg9[%c0_18, %c128], %24 {strides = array<i32>} : memref<128x256xf32, #tpu.memory_space<vmem>>, vector<128x128xf32>,
    } else {
    }
    %c0_i32_12 = arith.constant 0 : i32
    %17 = arith.cmpi eq, %arg1, %c0_i32_12 : i32
    %18 = arith.extui %17 : i1 to i32
    %c0_i32_13 = arith.constant 0 : i32
    %19 = arith.cmpi ne, %18, %c0_i32_13 : i32
    scf.if %19 {
      %c0_14 = arith.constant 0 : index
      %c0_15 = arith.constant 0 : index
      %20 = vector.load %arg9[%c0_14, %c0_15] : memref<128x256xf32, #tpu.memory_space<vmem>>, vector<128x128xf32>
      %21 = tpu.iota {dimensions = array<i32: 1>} : vector<128x128xi32>
      %c32_i32 = arith.constant 32 : i32
      %22 = vector.broadcast %c32_i32 : i32 to vector<128x128xi32>
      %23 = arith.cmpi eq, %21, %22 : vector<128x128xi32>
      %cst_16 = arith.constant 0.000000e+00 : f32
      %24 = vector.broadcast %cst_16 : f32 to vector<128x128xf32>
      %25 = arith.select %23, %20, %24 : vector<128x128xi1>, vector<128x128xf32>
      %cst_17 = arith.constant dense<0.000000e+00> : vector<128xf32>
      %26 = vector.multi_reduction <add>, %25, %cst_17 [1] : vector<128x128xf32> to vector<128xf32>
      %27 = vector.shape_cast %26 : vector<128xf32> to vector<128x1xf32>
      %cst_18 = arith.constant 0.000000e+00 : f32
      %28 = vector.broadcast %cst_18 : f32 to vector<128x1xf32>
      %29 = arith.cmpf ogt, %27, %28 : vector<128x1xf32>
      %cst_19 = arith.constant 1.000000e+00 : f32
      %30 = vector.broadcast %cst_19 : f32 to vector<128x1xf32>
      %31 = arith.maximumf %27, %30 : vector<128x1xf32>
      %cst_20 = arith.constant 1.000000e+00 : f32
      %32 = vector.broadcast %cst_20 : f32 to vector<128x1xf32>
      %33 = arith.divf %32, %31 : vector<128x1xf32>
      %cst_21 = arith.constant 0.000000e+00 : f32
      %34 = vector.broadcast %cst_21 : f32 to vector<128x1xf32>
      %35 = arith.select %29, %33, %34 : vector<128x1xi1>, vector<128x1xf32>
      %36 = vector.broadcast %35 : vector<128x1xf32> to vector<128x128xf32>
      %37 = arith.mulf %20, %36 : vector<128x128xf32>
      %c0_22 = arith.constant 0 : index
      %c0_23 = arith.constant 0 : index
      %38 = vector.load %arg9[%c0_22, %c0_23] : memref<128x256xf32, #tpu.memory_space<vmem>>, vector<128x128xf32>
      tpu.vector_store %arg9[%c0_22, %c0_23], %37 {strides = array<i32>} : memref<128x256xf32, #tpu.memory_space<vmem>>, vector<128x128xf32>,
      %c0_24 = arith.constant 0 : index
      %c0_25 = arith.constant 0 : index
      %39 = vector.load %arg9[%c0_24, %c0_25] : memref<128x256xf32, #tpu.memory_space<vmem>>, vector<128x256xf32>
      %40 = arith.truncf %39 : vector<128x256xf32> to vector<128x256xbf16>
      %41 = arith.extf %40 : vector<128x256xbf16> to vector<128x256xf32>
      %42 = arith.subf %39, %41 : vector<128x256xf32>
      %43 = arith.truncf %42 : vector<128x256xf32> to vector<128x256xbf16>
      %c0_26 = arith.constant 0 : index
      %c0_27 = arith.constant 0 : index
      %44 = vector.load %arg5[%c0_26, %c0_27] : memref<256x128xbf16, #tpu.memory_space<vmem>>, vector<256x128xbf16>
      %cst_28 = arith.constant dense<0.000000e+00> : vector<128x128xf32>
      %45 = tpu.matmul %40, %44, %cst_28 {dimension_numbers = #tpu.dot_dimension_numbers<[1], [0], [0], [1], [0, 0, 1, 1], [], []>} : vector<128x256xbf16>, vector<256x128xbf16>, vector<128x128xf32> -> vector<128x128xf32>
      %c0_29 = arith.constant 0 : index
      %c0_30 = arith.constant 0 : index
      %46 = vector.load %arg6[%c0_29, %c0_30] : memref<256x128xbf16, #tpu.memory_space<vmem>>, vector<256x128xbf16>
      %cst_31 = arith.constant dense<0.000000e+00> : vector<128x128xf32>
      %47 = tpu.matmul %40, %46, %cst_31 {dimension_numbers = #tpu.dot_dimension_numbers<[1], [0], [0], [1], [0, 0, 1, 1], [], []>} : vector<128x256xbf16>, vector<256x128xbf16>, vector<128x128xf32> -> vector<128x128xf32>
      %48 = arith.addf %45, %47 : vector<128x128xf32>
      %c0_32 = arith.constant 0 : index
      %c0_33 = arith.constant 0 : index
      %49 = vector.load %arg5[%c0_32, %c0_33] : memref<256x128xbf16, #tpu.memory_space<vmem>>, vector<256x128xbf16>
      %cst_34 = arith.constant dense<0.000000e+00> : vector<128x128xf32>
      %50 = tpu.matmul %43, %49, %cst_34 {dimension_numbers = #tpu.dot_dimension_numbers<[1], [0], [0], [1], [0, 0, 1, 1], [], []>} : vector<128x256xbf16>, vector<256x128xbf16>, vector<128x128xf32> -> vector<128x128xf32>
      %51 = arith.addf %48, %50 : vector<128x128xf32>
      %c0_35 = arith.constant 0 : index
      %c0_36 = arith.constant 0 : index
      %52 = vector.load %arg7[%c0_35, %c0_36] : memref<1x128xf32, #tpu.memory_space<vmem>>, vector<1x128xf32>
      %53 = vector.broadcast %52 : vector<1x128xf32> to vector<128x128xf32>
      %54 = arith.addf %51, %53 : vector<128x128xf32>
      %cst_37 = arith.constant 0.000000e+00 : f32
      %55 = vector.broadcast %cst_37 : f32 to vector<128x128xf32>
      %56 = arith.maximumf %54, %55 : vector<128x128xf32>
      %c0_38 = arith.constant 0 : index
      %c0_39 = arith.constant 0 : index
      %57 = vector.load %arg8[%c0_38, %c0_39] : memref<128x128xf32, #tpu.memory_space<vmem>>, vector<128x128xf32>
      tpu.vector_store %arg8[%c0_38, %c0_39], %56 {strides = array<i32>} : memref<128x128xf32, #tpu.memory_space<vmem>>, vector<128x128xf32>,
    } else {
    }
    return
  }
  func.func @transform_0(%arg0: i32, %arg1: i32) -> (i32, i32) {
    %c0_i32 = arith.constant 0 : i32
    return %arg0, %arg1 : i32, i32
  }
  func.func @transform_1(%arg0: i32, %arg1: i32) -> (i32, i32) {
    %c0_i32 = arith.constant 0 : i32
    %c0_i32_0 = arith.constant 0 : i32
    return %arg1, %c0_i32 : i32, i32
  }
  func.func @transform_2(%arg0: i32, %arg1: i32) -> (i32, i32) {
    %c0_i32 = arith.constant 0 : i32
    %c0_i32_0 = arith.constant 0 : i32
    return %arg1, %c0_i32 : i32, i32
  }
  func.func @transform_3(%arg0: i32, %arg1: i32) -> (i32, i32) {
    %c0_i32 = arith.constant 0 : i32
    %c0_i32_0 = arith.constant 0 : i32
    %c0_i32_1 = arith.constant 0 : i32
    return %c0_i32, %c0_i32_0 : i32, i32
  }
  func.func @transform_4(%arg0: i32, %arg1: i32) -> (i32, i32) {
    %c0_i32 = arith.constant 0 : i32
    %c0_i32_0 = arith.constant 0 : i32
    %c0_i32_1 = arith.constant 0 : i32
    return %c0_i32, %c0_i32_0 : i32, i32
  }
  func.func @transform_5(%arg0: i32, %arg1: i32) -> (i32, i32) {
    %c0_i32 = arith.constant 0 : i32
    %c0_i32_0 = arith.constant 0 : i32
    %c0_i32_1 = arith.constant 0 : i32
    return %c0_i32, %c0_i32_0 : i32, i32
  }
  func.func @transform_6(%arg0: i32, %arg1: i32) -> (i32, i32) {
    %c0_i32 = arith.constant 0 : i32
    %c0_i32_0 = arith.constant 0 : i32
    return %arg0, %c0_i32 : i32, i32
  }
}

</mosaic_0001>

<llo_original>
// kernel: tpu_custom_call.1
$region0: #{tpu_custom_call.1}
  #allocation0 [shape = 'u32[]', space=smem, size = 0x4, offset = 0x4, fixed_abs, tag = 'smem constant byte address 0x4 - core index']
  #allocation1 [shape = 'u32[144,128]{1,0:T(1,128)}', space=vmem, size = 0x12000, scoped, tag = 'internal scratch']
  #allocation2 [shape = 'f32[128,256]{1,0:T(8,128)}', space=vmem, size = 0x20000, scoped, tag = 'scratch operand']
  %s0 = inlined_call_operand.hbm [shape: s8[128,128], index: 0, kind: input, shape index: {}]
  %s1 = inlined_call_operand.hbm [shape: bf16[128,128], index: 1, kind: input, shape index: {}]
  %s2 = inlined_call_operand.hbm [shape: bf16[128,128], index: 2, kind: input, shape index: {}]
  %s3 = inlined_call_operand.hbm [shape: bf16[256,128], index: 3, kind: input, shape index: {}]
  %s4 = inlined_call_operand.hbm [shape: bf16[256,128], index: 4, kind: input, shape index: {}]
  %s5 = inlined_call_operand.vmem [shape: f32[1,128], index: 5, kind: input, shape index: {}]
  %s6 = inlined_call_operand.hbm [shape: f32[128,128], index: 6, kind: output, shape index: {}]
  %s7 = sld [smem:[#allocation0]]
  $region66: #{tpu_custom_call.1} parent=0
    _
  %s9 = ssub.s32 1, %s7
  %s10 = scalar_select 0, %s9, %s7
  $region1: #{tpu_custom_call.1} parent=0
    #allocation3 [shape = 'u8[16384]{0}', space=vmem, size = 0x4000, scoped, tag = 'input window, operand 0, single buffered']
    #allocation4 [shape = 's32[1]{0}', space=sflag, size = 0x4, scoped, tag = 'scoped memory for tpu_custom_call.1']
    #allocation5 [shape = 's32[1]{0}', space=sflag, size = 0x4, scoped, tag = 'scoped memory for tpu_custom_call.1']
    #allocation6 [shape = 'u8[32768]{0}', space=vmem, size = 0x8000, scoped, tag = 'input window, operand 1, single buffered']
    #allocation7 [shape = 's32[1]{0}', space=sflag, size = 0x4, scoped, tag = 'scoped memory for tpu_custom_call.1']
    #allocation8 [shape = 'u8[32768]{0}', space=vmem, size = 0x8000, scoped, tag = 'input window, operand 2, single buffered']
    #allocation9 [shape = 'u8[65536]{0}', space=vmem, size = 0x10000, scoped, tag = 'input window, operand 3, single buffered']
    #allocation10 [shape = 's32[1]{0}', space=sflag, size = 0x4, scoped, tag = 'scoped memory for tpu_custom_call.1']
    #allocation11 [shape = 'u8[65536]{0}', space=vmem, size = 0x10000, scoped, tag = 'input window, operand 4, single buffered']
    #allocation12 [shape = 'u8[65536]{0}', space=vmem, size = 0x10000, scoped, tag = 'output window, operand 0, single buffered']
    %11 = vsyncpa [#allocation4], 0
    %12 = vsyncpa [#allocation7], 0
    %13 = vsyncpa [#allocation10], 0
    %14 = vsyncpa [#allocation5], 0
    // Predicated region
    $region2: #{tpu_custom_call.1} parent=1 // pred_check
      _
    $region3: #{tpu_custom_call.1} parent=1 // pred_check_branch
      %16 = sbr.rel (0) target = $region5
    $region4: #{tpu_custom_call.1} parent=1 // pred_region
      %s18 = ssub.s32 512, 512
      %19 = vsyncadd [#allocation4], %s18
      %s20 = sshll.u32 [#allocation3], 4
      %s21 = int_to_ptr.vmem [resolvable:$true] %s20
      %26 = dma.hbm_to_vmem [thread:$0]  %s0, 512, %s21, [#allocation4], 128, 128, 8
    $region5: #{tpu_custom_call.1} parent=1 // pred_fallthru
      _
    // Predicated region
    $region6: #{tpu_custom_call.1} parent=1 // pred_check
      _
    $region7: #{tpu_custom_call.1} parent=1 // pred_check_branch
      %28 = sbr.rel (0) target = $region9
    $region8: #{tpu_custom_call.1} parent=1 // pred_region
      %s30 = ssub.s32 1024, 1024
      %31 = vsyncadd [#allocation7], %s30
      %s32 = sshll.u32 [#allocation6], 4
      %s33 = int_to_ptr.vmem [resolvable:$true] %s32
      %38 = dma.hbm_to_vmem [thread:$0]  %s1, 1024, %s33, [#allocation7], 64, 64, 4
    $region9: #{tpu_custom_call.1} parent=1 // pred_fallthru
      _
    // Predicated region
    $region10: #{tpu_custom_call.1} parent=1 // pred_check
      _
    $region11: #{tpu_custom_call.1} parent=1 // pred_check_branch
      %40 = sbr.rel (0) target = $region13
    $region12: #{tpu_custom_call.1} parent=1 // pred_region
      %s42 = ssub.s32 1024, 1024
      %43 = vsyncadd [#allocation7], %s42
      %s44 = sshll.u32 [#allocation8], 4
      %s45 = int_to_ptr.vmem [resolvable:$true] %s44
      %50 = dma.hbm_to_vmem [thread:$0]  %s2, 1024, %s45, [#allocation7], 64, 64, 4
    $region13: #{tpu_custom_call.1} parent=1 // pred_fallthru
      _
    // Predicated region
    $region14: #{tpu_custom_call.1} parent=1 // pred_check
      _
    $region15: #{tpu_custom_call.1} parent=1 // pred_check_branch
      %52 = sbr.rel (0) target = $region17
    $region16: #{tpu_custom_call.1} parent=1 // pred_region
      %s54 = ssub.s32 2048, 2048
      %55 = vsyncadd [#allocation10], %s54
      %s56 = sshll.u32 [#allocation9], 4
      %s57 = int_to_ptr.vmem [resolvable:$true] %s56
      %62 = dma.hbm_to_vmem [thread:$0]  %s3, 2048, %s57, [#allocation10], 64, 64, 4
    $region17: #{tpu_custom_call.1} parent=1 // pred_fallthru
      _
    // Predicated region
    $region18: #{tpu_custom_call.1} parent=1 // pred_check
      _
    $region19: #{tpu_custom_call.1} parent=1 // pred_check_branch
      %64 = sbr.rel (0) target = $region21
    $region20: #{tpu_custom_call.1} parent=1 // pred_region
      %s66 = ssub.s32 2048, 2048
      %67 = vsyncadd [#allocation10], %s66
      %s68 = sshll.u32 [#allocation11], 4
      %s69 = int_to_ptr.vmem [resolvable:$true] %s68
      %74 = dma.hbm_to_vmem [thread:$0]  %s4, 2048, %s69, [#allocation10], 64, 64, 4
    $region21: #{tpu_custom_call.1} parent=1 // pred_fallthru
      _
    // Predicated region
    $region22: #{tpu_custom_call.1} parent=1 // pred_check
      _
    $region23: #{tpu_custom_call.1} parent=1 // pred_check_branch
      %76 = sbr.rel (0) target = $region25
    $region24: #{tpu_custom_call.1} parent=1 // pred_region
      _
    $region25: #{tpu_custom_call.1} parent=1 // pred_fallthru
      _
    // Predicated region
    $region26: #{tpu_custom_call.1} parent=1 // pred_check
      _
    $region27: #{tpu_custom_call.1} parent=1 // pred_check_branch
      %78 = sbr.rel (0) target = $region29
    $region28: #{tpu_custom_call.1} parent=1 // pred_region
      %79 = dma.done [#allocation4], 512
    $region29: #{tpu_custom_call.1} parent=1 // pred_fallthru
      _
    // Predicated region
    $region30: #{tpu_custom_call.1} parent=1 // pred_check
      _
    $region31: #{tpu_custom_call.1} parent=1 // pred_check_branch
      %81 = sbr.rel (0) target = $region33
    $region32: #{tpu_custom_call.1} parent=1 // pred_region
      %82 = dma.done [#allocation7], 1024
    $region33: #{tpu_custom_call.1} parent=1 // pred_fallthru
      _
    // Predicated region
    $region34: #{tpu_custom_call.1} parent=1 // pred_check
      _
    $region35: #{tpu_custom_call.1} parent=1 // pred_check_branch
      %84 = sbr.rel (0) target = $region37
    $region36: #{tpu_custom_call.1} parent=1 // pred_region
      %85 = dma.done [#allocation7], 1024
    $region37: #{tpu_custom_call.1} parent=1 // pred_fallthru
      _
    // Predicated region
    $region38: #{tpu_custom_call.1} parent=1 // pred_check
      _
    $region39: #{tpu_custom_call.1} parent=1 // pred_check_branch
      %87 = sbr.rel (0) target = $region41
    $region40: #{tpu_custom_call.1} parent=1 // pred_region
      %88 = dma.done [#allocation10], 2048
    $region41: #{tpu_custom_call.1} parent=1 // pred_fallthru
      _
    // Predicated region
    $region42: #{tpu_custom_call.1} parent=1 // pred_check
      _
    $region43: #{tpu_custom_call.1} parent=1 // pred_check_branch
      %90 = sbr.rel (0) target = $region45
    $region44: #{tpu_custom_call.1} parent=1 // pred_region
      %91 = dma.done [#allocation10], 2048
    $region45: #{tpu_custom_call.1} parent=1 // pred_fallthru
      _
    %p93 = scmp.eq.s32.totalorder 0, 0
    // Predicated region
    $region46: #{tpu_custom_call.1} parent=1 // pred_check
      %p94 = pneg %p93
    $region47: #{tpu_custom_call.1} parent=1 // pred_check_branch
      %96 = sbr.rel (%p94) target = $region49
    $region48: #{tpu_custom_call.1} parent=1 // pred_region
      %97 = vst [vmem:[#allocation2] sm:$0xff] 0.0
      %98 = vst [vmem:[#allocation2 + $0x8] sm:$0xff] 0.0
      %99 = vst [vmem:[#allocation2 + $0x10] sm:$0xff] 0.0
      %100 = vst [vmem:[#allocation2 + $0x18] sm:$0xff] 0.0
      %101 = vst [vmem:[#allocation2 + $0x20] sm:$0xff] 0.0
      %102 = vst [vmem:[#allocation2 + $0x28] sm:$0xff] 0.0
      %103 = vst [vmem:[#allocation2 + $0x30] sm:$0xff] 0.0
      %104 = vst [vmem:[#allocation2 + $0x38] sm:$0xff] 0.0
      %105 = vst [vmem:[#allocation2 + $0x40] sm:$0xff] 0.0
      %106 = vst [vmem:[#allocation2 + $0x48] sm:$0xff] 0.0
      %107 = vst [vmem:[#allocation2 + $0x50] sm:$0xff] 0.0
      %108 = vst [vmem:[#allocation2 + $0x58] sm:$0xff] 0.0
      %109 = vst [vmem:[#allocation2 + $0x60] sm:$0xff] 0.0
      %110 = vst [vmem:[#allocation2 + $0x68] sm:$0xff] 0.0
      %111 = vst [vmem:[#allocation2 + $0x70] sm:$0xff] 0.0
      %112 = vst [vmem:[#allocation2 + $0x78] sm:$0xff] 0.0
      %113 = vst [vmem:[#allocation2 + $0x80] sm:$0xff] 0.0
      %114 = vst [vmem:[#allocation2 + $0x88] sm:$0xff] 0.0
      %115 = vst [vmem:[#allocation2 + $0x90] sm:$0xff] 0.0
      %116 = vst [vmem:[#allocation2 + $0x98] sm:$0xff] 0.0
      %117 = vst [vmem:[#allocation2 + $0xa0] sm:$0xff] 0.0
      %118 = vst [vmem:[#allocation2 + $0xa8] sm:$0xff] 0.0
      %119 = vst [vmem:[#allocation2 + $0xb0] sm:$0xff] 0.0
      %120 = vst [vmem:[#allocation2 + $0xb8] sm:$0xff] 0.0
      %121 = vst [vmem:[#allocation2 + $0xc0] sm:$0xff] 0.0
      %122 = vst [vmem:[#allocation2 + $0xc8] sm:$0xff] 0.0
      %123 = vst [vmem:[#allocation2 + $0xd0] sm:$0xff] 0.0
      %124 = vst [vmem:[#allocation2 + $0xd8] sm:$0xff] 0.0
      %125 = vst [vmem:[#allocation2 + $0xe0] sm:$0xff] 0.0
      %126 = vst [vmem:[#allocation2 + $0xe8] sm:$0xff] 0.0
      %127 = vst [vmem:[#allocation2 + $0xf0] sm:$0xff] 0.0
      %128 = vst [vmem:[#allocation2 + $0xf8] sm:$0xff] 0.0
    $region49: #{tpu_custom_call.1} parent=1 // pred_fallthru
      _
    %v129 = vld [vmem:[#allocation3] sm:$0xff]
    %v130 = vld [vmem:[#allocation3 + $0x8] sm:$0xff]
    %v131 = vld [vmem:[#allocation3 + $0x10] sm:$0xff]
    %v132 = vld [vmem:[#allocation3 + $0x18] sm:$0xff]
    %v133 = vunpack.c.l.s8.bf16 %v129
    %v134 = vunpack.c.h.s8.bf16 %v129
    %v135 = vunpack.c.l.s8.bf16 %v130
    %v136 = vunpack.c.h.s8.bf16 %v130
    %v137 = vunpack.c.l.s8.bf16 %v131
    %v138 = vunpack.c.h.s8.bf16 %v131
    %v139 = vunpack.c.l.s8.bf16 %v132
    %v140 = vunpack.c.h.s8.bf16 %v132
    %v141 = vld [vmem:[#allocation6] sm:$0xf]
    %v142 = vld [vmem:[#allocation6 + $0x4] sm:$0xf]
    %v143 = vld [vmem:[#allocation6 + $0x8] sm:$0xf]
    %v144 = vld [vmem:[#allocation6 + $0xc] sm:$0xf]
    %v145 = vld [vmem:[#allocation6 + $0x10] sm:$0xf]
    %v146 = vld [vmem:[#allocation6 + $0x14] sm:$0xf]
    %v147 = vld [vmem:[#allocation6 + $0x18] sm:$0xf]
    %v148 = vld [vmem:[#allocation6 + $0x1c] sm:$0xf]
    %v149 = vld [vmem:[#allocation6 + $0x20] sm:$0xf]
    %v150 = vld [vmem:[#allocation6 + $0x24] sm:$0xf]
    %v151 = vld [vmem:[#allocation6 + $0x28] sm:$0xf]
    %v152 = vld [vmem:[#allocation6 + $0x2c] sm:$0xf]
    %v153 = vld [vmem:[#allocation6 + $0x30] sm:$0xf]
    %v154 = vld [vmem:[#allocation6 + $0x34] sm:$0xf]
    %v155 = vld [vmem:[#allocation6 + $0x38] sm:$0xf]
    %v156 = vld [vmem:[#allocation6 + $0x3c] sm:$0xf]
    %v157 = vld [vmem:[#allocation8] sm:$0xf]
    %v158 = vld [vmem:[#allocation8 + $0x4] sm:$0xf]
    %v159 = vld [vmem:[#allocation8 + $0x8] sm:$0xf]
    %v160 = vld [vmem:[#allocation8 + $0xc] sm:$0xf]
    %v161 = vld [vmem:[#allocation8 + $0x10] sm:$0xf]
    %v162 = vld [vmem:[#allocation8 + $0x14] sm:$0xf]
    %v163 = vld [vmem:[#allocation8 + $0x18] sm:$0xf]
    %v164 = vld [vmem:[#allocation8 + $0x1c] sm:$0xf]
    %v165 = vld [vmem:[#allocation8 + $0x20] sm:$0xf]
    %v166 = vld [vmem:[#allocation8 + $0x24] sm:$0xf]
    %v167 = vld [vmem:[#allocation8 + $0x28] sm:$0xf]
    %v168 = vld [vmem:[#allocation8 + $0x2c] sm:$0xf]
    %v169 = vld [vmem:[#allocation8 + $0x30] sm:$0xf]
    %v170 = vld [vmem:[#allocation8 + $0x34] sm:$0xf]
    %v171 = vld [vmem:[#allocation8 + $0x38] sm:$0xf]
    %v172 = vld [vmem:[#allocation8 + $0x3c] sm:$0xf]
    %v189 = vunpack.c.l.b16 %v157
    %v190 = vunpack.c.l.b16 %v158
    %v191 = vunpack.c.l.b16 %v159
    %v192 = vunpack.c.l.b16 %v160
    %v193 = vunpack.c.l.b16 %v161
    %v194 = vunpack.c.l.b16 %v162
    %v195 = vunpack.c.l.b16 %v163
    %v196 = vunpack.c.l.b16 %v164
    %v197 = vunpack.c.l.b16 %v165
    %v198 = vunpack.c.l.b16 %v166
    %v199 = vunpack.c.l.b16 %v167
    %v200 = vunpack.c.l.b16 %v168
    %v201 = vunpack.c.l.b16 %v169
    %v202 = vunpack.c.l.b16 %v170
    %v203 = vunpack.c.l.b16 %v171
    %v204 = vunpack.c.l.b16 %v172
    %v205 = vpack.c.b16 %v190, %v189
    %v206 = vpack.c.b16 %v192, %v191
    %v207 = vpack.c.b16 %v194, %v193
    %v208 = vpack.c.b16 %v196, %v195
    %v209 = vpack.c.b16 %v198, %v197
    %v210 = vpack.c.b16 %v200, %v199
    %v211 = vpack.c.b16 %v202, %v201
    %v212 = vpack.c.b16 %v204, %v203
    %221 = vmatprep.subr.bf16.mxu0 0
    %222 = vmatpush1.bf16.msra.mxu0 %v205
    %223 = vmatprep.subr.bf16.mxu0 0
    %224 = vmatpush1.bf16.msra.mxu0 %v206
    %225 = vmatprep.subr.bf16.mxu0 0
    %226 = vmatpush1.bf16.msra.mxu0 %v207
    %227 = vmatprep.subr.bf16.mxu0 0
    %228 = vmatpush1.bf16.msra.mxu0 %v208
    %229 = vmatprep.subr.bf16.mxu0 0
    %230 = vmatpush1.bf16.msra.mxu0 %v209
    %231 = vmatprep.subr.bf16.mxu0 0
    %232 = vmatpush1.bf16.msra.mxu0 %v210
    %233 = vmatprep.subr.bf16.mxu0 0
    %234 = vmatpush1.bf16.msra.mxu0 %v211
    %235 = vmatprep.subr.bf16.mxu0 0
    %236 = vmatpush1.bf16.msra.mxu0 %v212
    %237 = vmatprep.subr.bf16.mxu0 0
    %238 = vmatpush1.bf16.msra.mxu0 0
    %239 = vmatprep.subr.bf16.mxu0 0
    %240 = vmatpush1.bf16.msra.mxu0 0
    %241 = vmatprep.subr.bf16.mxu0 0
    %242 = vmatpush1.bf16.msra.mxu0 0
    %243 = vmatprep.subr.bf16.mxu0 0
    %244 = vmatpush1.bf16.msra.mxu0 0
    %245 = vmatprep.subr.bf16.mxu0 0
    %246 = vmatpush1.bf16.msra.mxu0 0
    %247 = vmatprep.subr.bf16.mxu0 0
    %248 = vmatpush1.bf16.msra.mxu0 0
    %249 = vmatprep.subr.bf16.mxu0 0
    %250 = vmatpush1.bf16.msra.mxu0 0
    %251 = vmatprep.subr.bf16.mxu0 0
    %252 = vmatpush1.bf16.msra.mxu0 0
    %253 = vmatprep.mubr.bf16.mxu0 0
    %254 = vmatmul.mubr.bf16.gmra.mrb[0].mxu0 %v133
    %v255 = vpop.f32.mrb[0].mxu0
    %v256 = vadd.f32 0.0, %v255
    %v257 = vpop.f32.mrb[0].mxu0
    %v258 = vpop.f32.mrb[0].mxu0
    %v259 = vadd.f32 0.0, %v258
    %v260 = vpop.f32.mrb[0].mxu0
    %261 = vmatprep.mubr.bf16.mxu0 0
    %262 = vmatmul.mubr.bf16.gmra.mrb[0].mxu0 %v134
    %v263 = vpop.f32.mrb[0].mxu0
    %v264 = vadd.f32 0.0, %v263
    %v265 = vpop.f32.mrb[0].mxu0
    %v266 = vpop.f32.mrb[0].mxu0
    %v267 = vadd.f32 0.0, %v266
    %v268 = vpop.f32.mrb[0].mxu0
    %269 = vmatprep.mubr.bf16.mxu0 0
    %270 = vmatmul.mubr.bf16.gmra.mrb[0].mxu0 %v135
    %v271 = vpop.f32.mrb[0].mxu0
    %v272 = vadd.f32 0.0, %v271
    %v273 = vpop.f32.mrb[0].mxu0
    %v274 = vpop.f32.mrb[0].mxu0
    %v275 = vadd.f32 0.0, %v274
    %v276 = vpop.f32.mrb[0].mxu0
    %277 = vmatprep.mubr.bf16.mxu0 0
    %278 = vmatmul.mubr.bf16.gmra.mrb[0].mxu0 %v136
    %v279 = vpop.f32.mrb[0].mxu0
    %v280 = vadd.f32 0.0, %v279
    %v281 = vpop.f32.mrb[0].mxu0
    %v282 = vpop.f32.mrb[0].mxu0
    %v283 = vadd.f32 0.0, %v282
    %v284 = vpop.f32.mrb[0].mxu0
    %285 = vmatprep.mubr.bf16.mxu0 0
    %286 = vmatmul.mubr.bf16.gmra.mrb[0].mxu0 %v137
    %v287 = vpop.f32.mrb[0].mxu0
    %v288 = vadd.f32 0.0, %v287
    %v289 = vpop.f32.mrb[0].mxu0
    %v290 = vpop.f32.mrb[0].mxu0
    %v291 = vadd.f32 0.0, %v290
    %v292 = vpop.f32.mrb[0].mxu0
    %293 = vmatprep.mubr.bf16.mxu0 0
    %294 = vmatmul.mubr.bf16.gmra.mrb[0].mxu0 %v138
    %v295 = vpop.f32.mrb[0].mxu0
    %v296 = vadd.f32 0.0, %v295
    %v297 = vpop.f32.mrb[0].mxu0
    %v298 = vpop.f32.mrb[0].mxu0
    %v299 = vadd.f32 0.0, %v298
    %v300 = vpop.f32.mrb[0].mxu0
    %301 = vmatprep.mubr.bf16.mxu0 0
    %302 = vmatmul.mubr.bf16.gmra.mrb[0].mxu0 %v139
    %v303 = vpop.f32.mrb[0].mxu0
    %v304 = vadd.f32 0.0, %v303
    %v305 = vpop.f32.mrb[0].mxu0
    %v306 = vpop.f32.mrb[0].mxu0
    %v307 = vadd.f32 0.0, %v306
    %v308 = vpop.f32.mrb[0].mxu0
    %309 = vmatprep.mubr.bf16.mxu0 0
    %310 = vmatmul.mubr.bf16.gmra.mrb[0].mxu0 %v140
    %v311 = vpop.f32.mrb[0].mxu0
    %v312 = vadd.f32 0.0, %v311
    %v313 = vpop.f32.mrb[0].mxu0
    %v314 = vpop.f32.mrb[0].mxu0
    %v315 = vadd.f32 0.0, %v314
    %v316 = vpop.f32.mrb[0].mxu0
    %317 = vdwg.mxu0
    %v334 = vunpack.c.l.b16 %v141
    %v335 = vunpack.c.l.b16 %v142
    %v336 = vunpack.c.l.b16 %v143
    %v337 = vunpack.c.l.b16 %v144
    %v338 = vunpack.c.l.b16 %v145
    %v339 = vunpack.c.l.b16 %v146
    %v340 = vunpack.c.l.b16 %v147
    %v341 = vunpack.c.l.b16 %v148
    %v342 = vunpack.c.l.b16 %v149
    %v343 = vunpack.c.l.b16 %v150
    %v344 = vunpack.c.l.b16 %v151
    %v345 = vunpack.c.l.b16 %v152
    %v346 = vunpack.c.l.b16 %v153
    %v347 = vunpack.c.l.b16 %v154
    %v348 = vunpack.c.l.b16 %v155
    %v349 = vunpack.c.l.b16 %v156
    %v350 = vpack.c.b16 %v335, %v334
    %v351 = vpack.c.b16 %v337, %v336
    %v352 = vpack.c.b16 %v339, %v338
    %v353 = vpack.c.b16 %v341, %v340
    %v354 = vpack.c.b16 %v343, %v342
    %v355 = vpack.c.b16 %v345, %v344
    %v356 = vpack.c.b16 %v347, %v346
    %v357 = vpack.c.b16 %v349, %v348
    %366 = vmatprep.subr.bf16.mxu0 0
    %367 = vmatpush1.bf16.msra.mxu0 %v350
    %368 = vmatprep.subr.bf16.mxu0 0
    %369 = vmatpush1.bf16.msra.mxu0 %v351
    %370 = vmatprep.subr.bf16.mxu0 0
    %371 = vmatpush1.bf16.msra.mxu0 %v352
    %372 = vmatprep.subr.bf16.mxu0 0
    %373 = vmatpush1.bf16.msra.mxu0 %v353
    %374 = vmatprep.subr.bf16.mxu0 0
    %375 = vmatpush1.bf16.msra.mxu0 %v354
    %376 = vmatprep.subr.bf16.mxu0 0
    %377 = vmatpush1.bf16.msra.mxu0 %v355
    %378 = vmatprep.subr.bf16.mxu0 0
    %379 = vmatpush1.bf16.msra.mxu0 %v356
    %380 = vmatprep.subr.bf16.mxu0 0
    %381 = vmatpush1.bf16.msra.mxu0 %v357
    %382 = vmatprep.subr.bf16.mxu0 0
    %383 = vmatpush1.bf16.msra.mxu0 0
    %384 = vmatprep.subr.bf16.mxu0 0
    %385 = vmatpush1.bf16.msra.mxu0 0
    %386 = vmatprep.subr.bf16.mxu0 0
    %387 = vmatpush1.bf16.msra.mxu0 0
    %388 = vmatprep.subr.bf16.mxu0 0
    %389 = vmatpush1.bf16.msra.mxu0 0
    %390 = vmatprep.subr.bf16.mxu0 0
    %391 = vmatpush1.bf16.msra.mxu0 0
    %392 = vmatprep.subr.bf16.mxu0 0
    %393 = vmatpush1.bf16.msra.mxu0 0
    %394 = vmatprep.subr.bf16.mxu0 0
    %395 = vmatpush1.bf16.msra.mxu0 0
    %396 = vmatprep.subr.bf16.mxu0 0
    %397 = vmatpush1.bf16.msra.mxu0 0
    %398 = vmatprep.mubr.bf16.mxu0 0
    %399 = vmatmul.mubr.bf16.gmra.mrb[0].mxu0 %v133
    %v400 = vpop.f32.mrb[0].mxu0
    %v401 = vadd.f32 %v256, %v400
    %v402 = vpop.f32.mrb[0].mxu0
    %v403 = vpop.f32.mrb[0].mxu0
    %v404 = vadd.f32 %v259, %v403
    %v405 = vpop.f32.mrb[0].mxu0
    %406 = vmatprep.mubr.bf16.mxu0 0
    %407 = vmatmul.mubr.bf16.gmra.mrb[0].mxu0 %v134
    %v408 = vpop.f32.mrb[0].mxu0
    %v409 = vadd.f32 %v264, %v408
    %v410 = vpop.f32.mrb[0].mxu0
    %v411 = vpop.f32.mrb[0].mxu0
    %v412 = vadd.f32 %v267, %v411
    %v413 = vpop.f32.mrb[0].mxu0
    %414 = vmatprep.mubr.bf16.mxu0 0
    %415 = vmatmul.mubr.bf16.gmra.mrb[0].mxu0 %v135
    %v416 = vpop.f32.mrb[0].mxu0
    %v417 = vadd.f32 %v272, %v416
    %v418 = vpop.f32.mrb[0].mxu0
    %v419 = vpop.f32.mrb[0].mxu0
    %v420 = vadd.f32 %v275, %v419
    %v421 = vpop.f32.mrb[0].mxu0
    %422 = vmatprep.mubr.bf16.mxu0 0
    %423 = vmatmul.mubr.bf16.gmra.mrb[0].mxu0 %v136
    %v424 = vpop.f32.mrb[0].mxu0
    %v425 = vadd.f32 %v280, %v424
    %v426 = vpop.f32.mrb[0].mxu0
    %v427 = vpop.f32.mrb[0].mxu0
    %v428 = vadd.f32 %v283, %v427
    %v429 = vpop.f32.mrb[0].mxu0
    %430 = vmatprep.mubr.bf16.mxu0 0
    %431 = vmatmul.mubr.bf16.gmra.mrb[0].mxu0 %v137
    %v432 = vpop.f32.mrb[0].mxu0
    %v433 = vadd.f32 %v288, %v432
    %v434 = vpop.f32.mrb[0].mxu0
    %v435 = vpop.f32.mrb[0].mxu0
    %v436 = vadd.f32 %v291, %v435
    %v437 = vpop.f32.mrb[0].mxu0
    %438 = vmatprep.mubr.bf16.mxu0 0
    %439 = vmatmul.mubr.bf16.gmra.mrb[0].mxu0 %v138
    %v440 = vpop.f32.mrb[0].mxu0
    %v441 = vadd.f32 %v296, %v440
    %v442 = vpop.f32.mrb[0].mxu0
    %v443 = vpop.f32.mrb[0].mxu0
    %v444 = vadd.f32 %v299, %v443
    %v445 = vpop.f32.mrb[0].mxu0
    %446 = vmatprep.mubr.bf16.mxu0 0
    %447 = vmatmul.mubr.bf16.gmra.mrb[0].mxu0 %v139
    %v448 = vpop.f32.mrb[0].mxu0
    %v449 = vadd.f32 %v304, %v448
    %v450 = vpop.f32.mrb[0].mxu0
    %v451 = vpop.f32.mrb[0].mxu0
    %v452 = vadd.f32 %v307, %v451
    %v453 = vpop.f32.mrb[0].mxu0
    %454 = vmatprep.mubr.bf16.mxu0 0
    %455 = vmatmul.mubr.bf16.gmra.mrb[0].mxu0 %v140
    %v456 = vpop.f32.mrb[0].mxu0
    %v457 = vadd.f32 %v312, %v456
    %v458 = vpop.f32.mrb[0].mxu0
    %v459 = vpop.f32.mrb[0].mxu0
    %v460 = vadd.f32 %v315, %v459
    %v461 = vpop.f32.mrb[0].mxu0
    %462 = vdwg.mxu0
    %v463 = vld [vmem:[#allocation2] sm:$0xff]
    %v464 = vld [vmem:[#allocation2 + $0x10] sm:$0xff]
    %v465 = vld [vmem:[#allocation2 + $0x20] sm:$0xff]
    %v466 = vld [vmem:[#allocation2 + $0x30] sm:$0xff]
    %v467 = vld [vmem:[#allocation2 + $0x40] sm:$0xff]
    %v468 = vld [vmem:[#allocation2 + $0x50] sm:$0xff]
    %v469 = vld [vmem:[#allocation2 + $0x60] sm:$0xff]
    %v470 = vld [vmem:[#allocation2 + $0x70] sm:$0xff]
    %v471 = vld [vmem:[#allocation2 + $0x80] sm:$0xff]
    %v472 = vld [vmem:[#allocation2 + $0x90] sm:$0xff]
    %v473 = vld [vmem:[#allocation2 + $0xa0] sm:$0xff]
    %v474 = vld [vmem:[#allocation2 + $0xb0] sm:$0xff]
    %v475 = vld [vmem:[#allocation2 + $0xc0] sm:$0xff]
    %v476 = vld [vmem:[#allocation2 + $0xd0] sm:$0xff]
    %v477 = vld [vmem:[#allocation2 + $0xe0] sm:$0xff]
    %v478 = vld [vmem:[#allocation2 + $0xf0] sm:$0xff]
    %v479 = vadd.f32 %v463, %v401
    %v480 = vadd.f32 %v464, %v404
    %v481 = vadd.f32 %v465, %v409
    %v482 = vadd.f32 %v466, %v412
    %v483 = vadd.f32 %v467, %v417
    %v484 = vadd.f32 %v468, %v420
    %v485 = vadd.f32 %v469, %v425
    %v486 = vadd.f32 %v470, %v428
    %v487 = vadd.f32 %v471, %v433
    %v488 = vadd.f32 %v472, %v436
    %v489 = vadd.f32 %v473, %v441
    %v490 = vadd.f32 %v474, %v444
    %v491 = vadd.f32 %v475, %v449
    %v492 = vadd.f32 %v476, %v452
    %v493 = vadd.f32 %v477, %v457
    %v494 = vadd.f32 %v478, %v460
    %495 = vst [vmem:[#allocation2] sm:$0xff] %v479
    %496 = vst [vmem:[#allocation2 + $0x10] sm:$0xff] %v480
    %497 = vst [vmem:[#allocation2 + $0x20] sm:$0xff] %v481
    %498 = vst [vmem:[#allocation2 + $0x30] sm:$0xff] %v482
    %499 = vst [vmem:[#allocation2 + $0x40] sm:$0xff] %v483
    %500 = vst [vmem:[#allocation2 + $0x50] sm:$0xff] %v484
    %501 = vst [vmem:[#allocation2 + $0x60] sm:$0xff] %v485
    %502 = vst [vmem:[#allocation2 + $0x70] sm:$0xff] %v486
    %503 = vst [vmem:[#allocation2 + $0x80] sm:$0xff] %v487
    %504 = vst [vmem:[#allocation2 + $0x90] sm:$0xff] %v488
    %505 = vst [vmem:[#allocation2 + $0xa0] sm:$0xff] %v489
    %506 = vst [vmem:[#allocation2 + $0xb0] sm:$0xff] %v490
    %507 = vst [vmem:[#allocation2 + $0xc0] sm:$0xff] %v491
    %508 = vst [vmem:[#allocation2 + $0xd0] sm:$0xff] %v492
    %509 = vst [vmem:[#allocation2 + $0xe0] sm:$0xff] %v493
    %510 = vst [vmem:[#allocation2 + $0xf0] sm:$0xff] %v494
    %p511 = scmp.eq.s32.totalorder 0, 0
    // Predicated region
    $region50: #{tpu_custom_call.1} parent=1 // pred_check
      %p512 = pneg %p511
    $region51: #{tpu_custom_call.1} parent=1 // pred_check_branch
      %514 = sbr.rel (%p512) target = $region53
    $region52: #{tpu_custom_call.1} parent=1 // pred_region
      %v515 = vld [vmem:[#allocation6] sm:$0xf]
      %v516 = vld [vmem:[#allocation6 + $0x4] sm:$0xf]
      %v517 = vld [vmem:[#allocation6 + $0x8] sm:$0xf]
      %v518 = vld [vmem:[#allocation6 + $0xc] sm:$0xf]
      %v519 = vld [vmem:[#allocation6 + $0x10] sm:$0xf]
      %v520 = vld [vmem:[#allocation6 + $0x14] sm:$0xf]
      %v521 = vld [vmem:[#allocation6 + $0x18] sm:$0xf]
      %v522 = vld [vmem:[#allocation6 + $0x1c] sm:$0xf]
      %v523 = vld [vmem:[#allocation6 + $0x20] sm:$0xf]
      %v524 = vld [vmem:[#allocation6 + $0x24] sm:$0xf]
      %v525 = vld [vmem:[#allocation6 + $0x28] sm:$0xf]
      %v526 = vld [vmem:[#allocation6 + $0x2c] sm:$0xf]
      %v527 = vld [vmem:[#allocation6 + $0x30] sm:$0xf]
      %v528 = vld [vmem:[#allocation6 + $0x34] sm:$0xf]
      %v529 = vld [vmem:[#allocation6 + $0x38] sm:$0xf]
      %v530 = vld [vmem:[#allocation6 + $0x3c] sm:$0xf]
      %v531 = vunpack.c.l.bf16 %v515
      %v532 = vunpack.c.l.bf16 %v516
      %v533 = vunpack.c.l.bf16 %v517
      %v534 = vunpack.c.l.bf16 %v518
      %v535 = vunpack.c.l.bf16 %v519
      %v536 = vunpack.c.l.bf16 %v520
      %v537 = vunpack.c.l.bf16 %v521
      %v538 = vunpack.c.l.bf16 %v522
      %v539 = vunpack.c.l.bf16 %v523
      %v540 = vunpack.c.l.bf16 %v524
      %v541 = vunpack.c.l.bf16 %v525
      %v542 = vunpack.c.l.bf16 %v526
      %v543 = vunpack.c.l.bf16 %v527
      %v544 = vunpack.c.l.bf16 %v528
      %v545 = vunpack.c.l.bf16 %v529
      %v546 = vunpack.c.l.bf16 %v530
      %v547 = vld [vmem:[#allocation8] sm:$0xf]
      %v548 = vld [vmem:[#allocation8 + $0x4] sm:$0xf]
      %v549 = vld [vmem:[#allocation8 + $0x8] sm:$0xf]
      %v550 = vld [vmem:[#allocation8 + $0xc] sm:$0xf]
      %v551 = vld [vmem:[#allocation8 + $0x10] sm:$0xf]
      %v552 = vld [vmem:[#allocation8 + $0x14] sm:$0xf]
      %v553 = vld [vmem:[#allocation8 + $0x18] sm:$0xf]
      %v554 = vld [vmem:[#allocation8 + $0x1c] sm:$0xf]
      %v555 = vld [vmem:[#allocation8 + $0x20] sm:$0xf]
      %v556 = vld [vmem:[#allocation8 + $0x24] sm:$0xf]
      %v557 = vld [vmem:[#allocation8 + $0x28] sm:$0xf]
      %v558 = vld [vmem:[#allocation8 + $0x2c] sm:$0xf]
      %v559 = vld [vmem:[#allocation8 + $0x30] sm:$0xf]
      %v560 = vld [vmem:[#allocation8 + $0x34] sm:$0xf]
      %v561 = vld [vmem:[#allocation8 + $0x38] sm:$0xf]
      %v562 = vld [vmem:[#allocation8 + $0x3c] sm:$0xf]
      %v563 = vunpack.c.l.bf16 %v547
      %v564 = vunpack.c.l.bf16 %v548
      %v565 = vunpack.c.l.bf16 %v549
      %v566 = vunpack.c.l.bf16 %v550
      %v567 = vunpack.c.l.bf16 %v551
      %v568 = vunpack.c.l.bf16 %v552
      %v569 = vunpack.c.l.bf16 %v553
      %v570 = vunpack.c.l.bf16 %v554
      %v571 = vunpack.c.l.bf16 %v555
      %v572 = vunpack.c.l.bf16 %v556
      %v573 = vunpack.c.l.bf16 %v557
      %v574 = vunpack.c.l.bf16 %v558
      %v575 = vunpack.c.l.bf16 %v559
      %v576 = vunpack.c.l.bf16 %v560
      %v577 = vunpack.c.l.bf16 %v561
      %v578 = vunpack.c.l.bf16 %v562
      %v579 = vadd.f32 %v531, %v563
      %v580 = vadd.f32 %v532, %v564
      %v581 = vadd.f32 %v533, %v565
      %v582 = vadd.f32 %v534, %v566
      %v583 = vadd.f32 %v535, %v567
      %v584 = vadd.f32 %v536, %v568
      %v585 = vadd.f32 %v537, %v569
      %v586 = vadd.f32 %v538, %v570
      %v587 = vadd.f32 %v539, %v571
      %v588 = vadd.f32 %v540, %v572
      %v589 = vadd.f32 %v541, %v573
      %v590 = vadd.f32 %v542, %v574
      %v591 = vadd.f32 %v543, %v575
      %v592 = vadd.f32 %v544, %v576
      %v593 = vadd.f32 %v545, %v577
      %v594 = vadd.f32 %v546, %v578
      %595 = vst [vmem:[#allocation2 + $0x8] sm:$0xff] %v579
      %596 = vst [vmem:[#allocation2 + $0x18] sm:$0xff] %v580
      %597 = vst [vmem:[#allocation2 + $0x28] sm:$0xff] %v581
      %598 = vst [vmem:[#allocation2 + $0x38] sm:$0xff] %v582
      %599 = vst [vmem:[#allocation2 + $0x48] sm:$0xff] %v583
      %600 = vst [vmem:[#allocation2 + $0x58] sm:$0xff] %v584
      %601 = vst [vmem:[#allocation2 + $0x68] sm:$0xff] %v585
      %602 = vst [vmem:[#allocation2 + $0x78] sm:$0xff] %v586
      %603 = vst [vmem:[#allocation2 + $0x88] sm:$0xff] %v587
      %604 = vst [vmem:[#allocation2 + $0x98] sm:$0xff] %v588
      %605 = vst [vmem:[#allocation2 + $0xa8] sm:$0xff] %v589
      %606 = vst [vmem:[#allocation2 + $0xb8] sm:$0xff] %v590
      %607 = vst [vmem:[#allocation2 + $0xc8] sm:$0xff] %v591
      %608 = vst [vmem:[#allocation2 + $0xd8] sm:$0xff] %v592
      %609 = vst [vmem:[#allocation2 + $0xe8] sm:$0xff] %v593
      %610 = vst [vmem:[#allocation2 + $0xf8] sm:$0xff] %v594
    $region53: #{tpu_custom_call.1} parent=1 // pred_fallthru
      _
    // Predicated region
    $region54: #{tpu_custom_call.1} parent=1 // pred_check
      %p611 = pneg %p93
    $region55: #{tpu_custom_call.1} parent=1 // pred_check_branch
      %613 = sbr.rel (%p611) target = $region57
    $region56: #{tpu_custom_call.1} parent=1 // pred_region
      %v614 = vld [vmem:[#allocation2] sm:$0xff]
      %v615 = vld [vmem:[#allocation2 + $0x10] sm:$0xff]
      %v616 = vld [vmem:[#allocation2 + $0x20] sm:$0xff]
      %v617 = vld [vmem:[#allocation2 + $0x30] sm:$0xff]
      %v618 = vld [vmem:[#allocation2 + $0x40] sm:$0xff]
      %v619 = vld [vmem:[#allocation2 + $0x50] sm:$0xff]
      %v620 = vld [vmem:[#allocation2 + $0x60] sm:$0xff]
      %v621 = vld [vmem:[#allocation2 + $0x70] sm:$0xff]
      %v622 = vld [vmem:[#allocation2 + $0x80] sm:$0xff]
      %v623 = vld [vmem:[#allocation2 + $0x90] sm:$0xff]
      %v624 = vld [vmem:[#allocation2 + $0xa0] sm:$0xff]
      %v625 = vld [vmem:[#allocation2 + $0xb0] sm:$0xff]
      %v626 = vld [vmem:[#allocation2 + $0xc0] sm:$0xff]
      %v627 = vld [vmem:[#allocation2 + $0xd0] sm:$0xff]
      %v628 = vld [vmem:[#allocation2 + $0xe0] sm:$0xff]
      %v629 = vld [vmem:[#allocation2 + $0xf0] sm:$0xff]
      %v630 = vlaneseq
      %v631 = vand.u32 %v630, 127
      %vm632 = vcmp.eq.s32.totalorder %v631, 32
      %v633 = vsel %vm632, %v614, 0.0
      %v634 = vsel %vm632, %v615, 0.0
      %v635 = vsel %vm632, %v616, 0.0
      %v636 = vsel %vm632, %v617, 0.0
      %v637 = vsel %vm632, %v618, 0.0
      %v638 = vsel %vm632, %v619, 0.0
      %v639 = vsel %vm632, %v620, 0.0
      %v640 = vsel %vm632, %v621, 0.0
      %v641 = vsel %vm632, %v622, 0.0
      %v642 = vsel %vm632, %v623, 0.0
      %v643 = vsel %vm632, %v624, 0.0
      %v644 = vsel %vm632, %v625, 0.0
      %v645 = vsel %vm632, %v626, 0.0
      %v646 = vsel %vm632, %v627, 0.0
      %v647 = vsel %vm632, %v628, 0.0
      %v648 = vsel %vm632, %v629, 0.0
      %649 = vadd.xlane.f32.xlu0 %v633
      %v650 = vpop.xlane.xlu0 %649
      %651 = vadd.xlane.f32.xlu0 %v634
      %v652 = vpop.xlane.xlu0 %651
      %653 = vadd.xlane.f32.xlu0 %v635
      %v654 = vpop.xlane.xlu0 %653
      %655 = vadd.xlane.f32.xlu0 %v636
      %v656 = vpop.xlane.xlu0 %655
      %657 = vadd.xlane.f32.xlu0 %v637
      %v658 = vpop.xlane.xlu0 %657
      %659 = vadd.xlane.f32.xlu0 %v638
      %v660 = vpop.xlane.xlu0 %659
      %661 = vadd.xlane.f32.xlu0 %v639
      %v662 = vpop.xlane.xlu0 %661
      %663 = vadd.xlane.f32.xlu0 %v640
      %v664 = vpop.xlane.xlu0 %663
      %665 = vadd.xlane.f32.xlu0 %v641
      %v666 = vpop.xlane.xlu0 %665
      %667 = vadd.xlane.f32.xlu0 %v642
      %v668 = vpop.xlane.xlu0 %667
      %669 = vadd.xlane.f32.xlu0 %v643
      %v670 = vpop.xlane.xlu0 %669
      %671 = vadd.xlane.f32.xlu0 %v644
      %v672 = vpop.xlane.xlu0 %671
      %673 = vadd.xlane.f32.xlu0 %v645
      %v674 = vpop.xlane.xlu0 %673
      %675 = vadd.xlane.f32.xlu0 %v646
      %v676 = vpop.xlane.xlu0 %675
      %677 = vadd.xlane.f32.xlu0 %v647
      %v678 = vpop.xlane.xlu0 %677
      %679 = vadd.xlane.f32.xlu0 %v648
      %v680 = vpop.xlane.xlu0 %679
      %vm681 = vcmp.gt.f32.partialorder %v650, 0.0
      %vm682 = vcmp.gt.f32.partialorder %v652, 0.0
      %vm683 = vcmp.gt.f32.partialorder %v654, 0.0
      %vm684 = vcmp.gt.f32.partialorder %v656, 0.0
      %vm685 = vcmp.gt.f32.partialorder %v658, 0.0
      %vm686 = vcmp.gt.f32.partialorder %v660, 0.0
      %vm687 = vcmp.gt.f32.partialorder %v662, 0.0
      %vm688 = vcmp.gt.f32.partialorder %v664, 0.0
      %vm689 = vcmp.gt.f32.partialorder %v666, 0.0
      %vm690 = vcmp.gt.f32.partialorder %v668, 0.0
      %vm691 = vcmp.gt.f32.partialorder %v670, 0.0
      %vm692 = vcmp.gt.f32.partialorder %v672, 0.0
      %vm693 = vcmp.gt.f32.partialorder %v674, 0.0
      %vm694 = vcmp.gt.f32.partialorder %v676, 0.0
      %vm695 = vcmp.gt.f32.partialorder %v678, 0.0
      %vm696 = vcmp.gt.f32.partialorder %v680, 0.0
      %v697 = vmax.f32 %v650, 1.0
      %v698 = vmax.f32 %v652, 1.0
      %v699 = vmax.f32 %v654, 1.0
      %v700 = vmax.f32 %v656, 1.0
      %v701 = vmax.f32 %v658, 1.0
      %v702 = vmax.f32 %v660, 1.0
      %v703 = vmax.f32 %v662, 1.0
      %v704 = vmax.f32 %v664, 1.0
      %v705 = vmax.f32 %v666, 1.0
      %v706 = vmax.f32 %v668, 1.0
      %v707 = vmax.f32 %v670, 1.0
      %v708 = vmax.f32 %v672, 1.0
      %v709 = vmax.f32 %v674, 1.0
      %v710 = vmax.f32 %v676, 1.0
      %v711 = vmax.f32 %v678, 1.0
      %v712 = vmax.f32 %v680, 1.0
      %v713 = vrcp.pop %v697
      %v714 = vmul.f32 1.0, %v713
      %v715 = vrcp.pop %v698
      %v716 = vmul.f32 1.0, %v715
      %v717 = vrcp.pop %v699
      %v718 = vmul.f32 1.0, %v717
      %v719 = vrcp.pop %v700
      %v720 = vmul.f32 1.0, %v719
      %v721 = vrcp.pop %v701
      %v722 = vmul.f32 1.0, %v721
      %v723 = vrcp.pop %v702
      %v724 = vmul.f32 1.0, %v723
      %v725 = vrcp.pop %v703
      %v726 = vmul.f32 1.0, %v725
      %v727 = vrcp.pop %v704
      %v728 = vmul.f32 1.0, %v727
      %v729 = vrcp.pop %v705
      %v730 = vmul.f32 1.0, %v729
      %v731 = vrcp.pop %v706
      %v732 = vmul.f32 1.0, %v731
      %v733 = vrcp.pop %v707
      %v734 = vmul.f32 1.0, %v733
      %v735 = vrcp.pop %v708
      %v736 = vmul.f32 1.0, %v735
      %v737 = vrcp.pop %v709
      %v738 = vmul.f32 1.0, %v737
      %v739 = vrcp.pop %v710
      %v740 = vmul.f32 1.0, %v739
      %v741 = vrcp.pop %v711
      %v742 = vmul.f32 1.0, %v741
      %v743 = vrcp.pop %v712
      %v744 = vmul.f32 1.0, %v743
      %v745 = vsel %vm681, %v714, 0.0
      %v746 = vsel %vm682, %v716, 0.0
      %v747 = vsel %vm683, %v718, 0.0
      %v748 = vsel %vm684, %v720, 0.0
      %v749 = vsel %vm685, %v722, 0.0
      %v750 = vsel %vm686, %v724, 0.0
      %v751 = vsel %vm687, %v726, 0.0
      %v752 = vsel %vm688, %v728, 0.0
      %v753 = vsel %vm689, %v730, 0.0
      %v754 = vsel %vm690, %v732, 0.0
      %v755 = vsel %vm691, %v734, 0.0
      %v756 = vsel %vm692, %v736, 0.0
      %v757 = vsel %vm693, %v738, 0.0
      %v758 = vsel %vm694, %v740, 0.0
      %v759 = vsel %vm695, %v742, 0.0
      %v760 = vsel %vm696, %v744, 0.0
      %v761 = vmul.f32 %v614, %v745
      %v762 = vmul.f32 %v615, %v746
      %v763 = vmul.f32 %v616, %v747
      %v764 = vmul.f32 %v617, %v748
      %v765 = vmul.f32 %v618, %v749
      %v766 = vmul.f32 %v619, %v750
      %v767 = vmul.f32 %v620, %v751
      %v768 = vmul.f32 %v621, %v752
      %v769 = vmul.f32 %v622, %v753
      %v770 = vmul.f32 %v623, %v754
      %v771 = vmul.f32 %v624, %v755
      %v772 = vmul.f32 %v625, %v756
      %v773 = vmul.f32 %v626, %v757
      %v774 = vmul.f32 %v627, %v758
      %v775 = vmul.f32 %v628, %v759
      %v776 = vmul.f32 %v629, %v760
      %777 = vst [vmem:[#allocation2] sm:$0xff] %v761
      %778 = vst [vmem:[#allocation2 + $0x10] sm:$0xff] %v762
      %779 = vst [vmem:[#allocation2 + $0x20] sm:$0xff] %v763
      %780 = vst [vmem:[#allocation2 + $0x30] sm:$0xff] %v764
      %781 = vst [vmem:[#allocation2 + $0x40] sm:$0xff] %v765
      %782 = vst [vmem:[#allocation2 + $0x50] sm:$0xff] %v766
      %783 = vst [vmem:[#allocation2 + $0x60] sm:$0xff] %v767
      %784 = vst [vmem:[#allocation2 + $0x70] sm:$0xff] %v768
      %785 = vst [vmem:[#allocation2 + $0x80] sm:$0xff] %v769
      %786 = vst [vmem:[#allocation2 + $0x90] sm:$0xff] %v770
      %787 = vst [vmem:[#allocation2 + $0xa0] sm:$0xff] %v771
      %788 = vst [vmem:[#allocation2 + $0xb0] sm:$0xff] %v772
      %789 = vst [vmem:[#allocation2 + $0xc0] sm:$0xff] %v773
      %790 = vst [vmem:[#allocation2 + $0xd0] sm:$0xff] %v774
      %791 = vst [vmem:[#allocation2 + $0xe0] sm:$0xff] %v775
      %792 = vst [vmem:[#allocation2 + $0xf0] sm:$0xff] %v776
      %v793 = vld [vmem:[#allocation2] sm:$0xff]
      %v794 = vld [vmem:[#allocation2 + $0x8] sm:$0xff]
      %v795 = vld [vmem:[#allocation2 + $0x10] sm:$0xff]
      %v796 = vld [vmem:[#allocation2 + $0x18] sm:$0xff]
      %v797 = vld [vmem:[#allocation2 + $0x20] sm:$0xff]
      %v798 = vld [vmem:[#allocation2 + $0x28] sm:$0xff]
      %v799 = vld [vmem:[#allocation2 + $0x30] sm:$0xff]
      %v800 = vld [vmem:[#allocation2 + $0x38] sm:$0xff]
      %v801 = vld [vmem:[#allocation2 + $0x40] sm:$0xff]
      %v802 = vld [vmem:[#allocation2 + $0x48] sm:$0xff]
      %v803 = vld [vmem:[#allocation2 + $0x50] sm:$0xff]
      %v804 = vld [vmem:[#allocation2 + $0x58] sm:$0xff]
      %v805 = vld [vmem:[#allocation2 + $0x60] sm:$0xff]
      %v806 = vld [vmem:[#allocation2 + $0x68] sm:$0xff]
      %v807 = vld [vmem:[#allocation2 + $0x70] sm:$0xff]
      %v808 = vld [vmem:[#allocation2 + $0x78] sm:$0xff]
      %v809 = vld [vmem:[#allocation2 + $0x80] sm:$0xff]
      %v810 = vld [vmem:[#allocation2 + $0x88] sm:$0xff]
      %v811 = vld [vmem:[#allocation2 + $0x90] sm:$0xff]
      %v812 = vld [vmem:[#allocation2 + $0x98] sm:$0xff]
      %v813 = vld [vmem:[#allocation2 + $0xa0] sm:$0xff]
      %v814 = vld [vmem:[#allocation2 + $0xa8] sm:$0xff]
      %v815 = vld [vmem:[#allocation2 + $0xb0] sm:$0xff]
      %v816 = vld [vmem:[#allocation2 + $0xb8] sm:$0xff]
      %v817 = vld [vmem:[#allocation2 + $0xc0] sm:$0xff]
      %v818 = vld [vmem:[#allocation2 + $0xc8] sm:$0xff]
      %v819 = vld [vmem:[#allocation2 + $0xd0] sm:$0xff]
      %v820 = vld [vmem:[#allocation2 + $0xd8] sm:$0xff]
      %v821 = vld [vmem:[#allocation2 + $0xe0] sm:$0xff]
      %v822 = vld [vmem:[#allocation2 + $0xe8] sm:$0xff]
      %v823 = vld [vmem:[#allocation2 + $0xf0] sm:$0xff]
      %v824 = vld [vmem:[#allocation2 + $0xf8] sm:$0xff]
      %v825 = vpack.c.bf16 %v795, %v793
      %v826 = vpack.c.bf16 %v796, %v794
      %v827 = vpack.c.bf16 %v799, %v797
      %v828 = vpack.c.bf16 %v800, %v798
      %v829 = vpack.c.bf16 %v803, %v801
      %v830 = vpack.c.bf16 %v804, %v802
      %v831 = vpack.c.bf16 %v807, %v805
      %v832 = vpack.c.bf16 %v808, %v806
      %v833 = vpack.c.bf16 %v811, %v809
      %v834 = vpack.c.bf16 %v812, %v810
      %v835 = vpack.c.bf16 %v815, %v813
      %v836 = vpack.c.bf16 %v816, %v814
      %v837 = vpack.c.bf16 %v819, %v817
      %v838 = vpack.c.bf16 %v820, %v818
      %v839 = vpack.c.bf16 %v823, %v821
      %v840 = vpack.c.bf16 %v824, %v822
      %v841 = vunpack.c.l.bf16 %v825
      %v842 = vunpack.c.l.bf16 %v826
      %v843 = vunpack.c.h.bf16 %v825
      %v844 = vunpack.c.h.bf16 %v826
      %v845 = vunpack.c.l.bf16 %v827
      %v846 = vunpack.c.l.bf16 %v828
      %v847 = vunpack.c.h.bf16 %v827
      %v848 = vunpack.c.h.bf16 %v828
      %v849 = vunpack.c.l.bf16 %v829
      %v850 = vunpack.c.l.bf16 %v830
      %v851 = vunpack.c.h.bf16 %v829
      %v852 = vunpack.c.h.bf16 %v830
      %v853 = vunpack.c.l.bf16 %v831
      %v854 = vunpack.c.l.bf16 %v832
      %v855 = vunpack.c.h.bf16 %v831
      %v856 = vunpack.c.h.bf16 %v832
      %v857 = vunpack.c.l.bf16 %v833
      %v858 = vunpack.c.l.bf16 %v834
      %v859 = vunpack.c.h.bf16 %v833
      %v860 = vunpack.c.h.bf16 %v834
      %v861 = vunpack.c.l.bf16 %v835
      %v862 = vunpack.c.l.bf16 %v836
      %v863 = vunpack.c.h.bf16 %v835
      %v864 = vunpack.c.h.bf16 %v836
      %v865 = vunpack.c.l.bf16 %v837
      %v866 = vunpack.c.l.bf16 %v838
      %v867 = vunpack.c.h.bf16 %v837
      %v868 = vunpack.c.h.bf16 %v838
      %v869 = vunpack.c.l.bf16 %v839
      %v870 = vunpack.c.l.bf16 %v840
      %v871 = vunpack.c.h.bf16 %v839
      %v872 = vunpack.c.h.bf16 %v840
      %v873 = vsub.f32 %v793, %v841
      %v874 = vsub.f32 %v794, %v842
      %v875 = vsub.f32 %v795, %v843
      %v876 = vsub.f32 %v796, %v844
      %v877 = vsub.f32 %v797, %v845
      %v878 = vsub.f32 %v798, %v846
      %v879 = vsub.f32 %v799, %v847
      %v880 = vsub.f32 %v800, %v848
      %v881 = vsub.f32 %v801, %v849
      %v882 = vsub.f32 %v802, %v850
      %v883 = vsub.f32 %v803, %v851
      %v884 = vsub.f32 %v804, %v852
      %v885 = vsub.f32 %v805, %v853
      %v886 = vsub.f32 %v806, %v854
      %v887 = vsub.f32 %v807, %v855
      %v888 = vsub.f32 %v808, %v856
      %v889 = vsub.f32 %v809, %v857
      %v890 = vsub.f32 %v810, %v858
      %v891 = vsub.f32 %v811, %v859
      %v892 = vsub.f32 %v812, %v860
      %v893 = vsub.f32 %v813, %v861
      %v894 = vsub.f32 %v814, %v862
      %v895 = vsub.f32 %v815, %v863
      %v896 = vsub.f32 %v816, %v864
      %v897 = vsub.f32 %v817, %v865
      %v898 = vsub.f32 %v818, %v866
      %v899 = vsub.f32 %v819, %v867
      %v900 = vsub.f32 %v820, %v868
      %v901 = vsub.f32 %v821, %v869
      %v902 = vsub.f32 %v822, %v870
      %v903 = vsub.f32 %v823, %v871
      %v904 = vsub.f32 %v824, %v872
      %v905 = vpack.c.bf16 %v875, %v873
      %v906 = vpack.c.bf16 %v876, %v874
      %v907 = vpack.c.bf16 %v879, %v877
      %v908 = vpack.c.bf16 %v880, %v878
      %v909 = vpack.c.bf16 %v883, %v881
      %v910 = vpack.c.bf16 %v884, %v882
      %v911 = vpack.c.bf16 %v887, %v885
      %v912 = vpack.c.bf16 %v888, %v886
      %v913 = vpack.c.bf16 %v891, %v889
      %v914 = vpack.c.bf16 %v892, %v890
      %v915 = vpack.c.bf16 %v895, %v893
      %v916 = vpack.c.bf16 %v896, %v894
      %v917 = vpack.c.bf16 %v899, %v897
      %v918 = vpack.c.bf16 %v900, %v898
      %v919 = vpack.c.bf16 %v903, %v901
      %v920 = vpack.c.bf16 %v904, %v902
      %v921 = vld [vmem:[#allocation9] sm:$0xf]
      %v922 = vld [vmem:[#allocation9 + $0x4] sm:$0xf]
      %v923 = vld [vmem:[#allocation9 + $0x8] sm:$0xf]
      %v924 = vld [vmem:[#allocation9 + $0xc] sm:$0xf]
      %v925 = vld [vmem:[#allocation9 + $0x10] sm:$0xf]
      %v926 = vld [vmem:[#allocation9 + $0x14] sm:$0xf]
      %v927 = vld [vmem:[#allocation9 + $0x18] sm:$0xf]
      %v928 = vld [vmem:[#allocation9 + $0x1c] sm:$0xf]
      %v929 = vld [vmem:[#allocation9 + $0x20] sm:$0xf]
      %v930 = vld [vmem:[#allocation9 + $0x24] sm:$0xf]
      %v931 = vld [vmem:[#allocation9 + $0x28] sm:$0xf]
      %v932 = vld [vmem:[#allocation9 + $0x2c] sm:$0xf]
      %v933 = vld [vmem:[#allocation9 + $0x30] sm:$0xf]
      %v934 = vld [vmem:[#allocation9 + $0x34] sm:$0xf]
      %v935 = vld [vmem:[#allocation9 + $0x38] sm:$0xf]
      %v936 = vld [vmem:[#allocation9 + $0x3c] sm:$0xf]
      %v937 = vld [vmem:[#allocation9 + $0x40] sm:$0xf]
      %v938 = vld [vmem:[#allocation9 + $0x44] sm:$0xf]
      %v939 = vld [vmem:[#allocation9 + $0x48] sm:$0xf]
      %v940 = vld [vmem:[#allocation9 + $0x4c] sm:$0xf]
      %v941 = vld [vmem:[#allocation9 + $0x50] sm:$0xf]
      %v942 = vld [vmem:[#allocation9 + $0x54] sm:$0xf]
      %v943 = vld [vmem:[#allocation9 + $0x58] sm:$0xf]
      %v944 = vld [vmem:[#allocation9 + $0x5c] sm:$0xf]
      %v945 = vld [vmem:[#allocation9 + $0x60] sm:$0xf]
      %v946 = vld [vmem:[#allocation9 + $0x64] sm:$0xf]
      %v947 = vld [vmem:[#allocation9 + $0x68] sm:$0xf]
      %v948 = vld [vmem:[#allocation9 + $0x6c] sm:$0xf]
      %v949 = vld [vmem:[#allocation9 + $0x70] sm:$0xf]
      %v950 = vld [vmem:[#allocation9 + $0x74] sm:$0xf]
      %v951 = vld [vmem:[#allocation9 + $0x78] sm:$0xf]
      %v952 = vld [vmem:[#allocation9 + $0x7c] sm:$0xf]
      %v953 = vld [vmem:[#allocation11] sm:$0xf]
      %v954 = vld [vmem:[#allocation11 + $0x4] sm:$0xf]
      %v955 = vld [vmem:[#allocation11 + $0x8] sm:$0xf]
      %v956 = vld [vmem:[#allocation11 + $0xc] sm:$0xf]
      %v957 = vld [vmem:[#allocation11 + $0x10] sm:$0xf]
      %v958 = vld [vmem:[#allocation11 + $0x14] sm:$0xf]
      %v959 = vld [vmem:[#allocation11 + $0x18] sm:$0xf]
      %v960 = vld [vmem:[#allocation11 + $0x1c] sm:$0xf]
      %v961 = vld [vmem:[#allocation11 + $0x20] sm:$0xf]
      %v962 = vld [vmem:[#allocation11 + $0x24] sm:$0xf]
      %v963 = vld [vmem:[#allocation11 + $0x28] sm:$0xf]
      %v964 = vld [vmem:[#allocation11 + $0x2c] sm:$0xf]
      %v965 = vld [vmem:[#allocation11 + $0x30] sm:$0xf]
      %v966 = vld [vmem:[#allocation11 + $0x34] sm:$0xf]
      %v967 = vld [vmem:[#allocation11 + $0x38] sm:$0xf]
      %v968 = vld [vmem:[#allocation11 + $0x3c] sm:$0xf]
      %v969 = vld [vmem:[#allocation11 + $0x40] sm:$0xf]
      %v970 = vld [vmem:[#allocation11 + $0x44] sm:$0xf]
      %v971 = vld [vmem:[#allocation11 + $0x48] sm:$0xf]
      %v972 = vld [vmem:[#allocation11 + $0x4c] sm:$0xf]
      %v973 = vld [vmem:[#allocation11 + $0x50] sm:$0xf]
      %v974 = vld [vmem:[#allocation11 + $0x54] sm:$0xf]
      %v975 = vld [vmem:[#allocation11 + $0x58] sm:$0xf]
      %v976 = vld [vmem:[#allocation11 + $0x5c] sm:$0xf]
      %v977 = vld [vmem:[#allocation11 + $0x60] sm:$0xf]
      %v978 = vld [vmem:[#allocation11 + $0x64] sm:$0xf]
      %v979 = vld [vmem:[#allocation11 + $0x68] sm:$0xf]
      %v980 = vld [vmem:[#allocation11 + $0x6c] sm:$0xf]
      %v981 = vld [vmem:[#allocation11 + $0x70] sm:$0xf]
      %v982 = vld [vmem:[#allocation11 + $0x74] sm:$0xf]
      %v983 = vld [vmem:[#allocation11 + $0x78] sm:$0xf]
      %v984 = vld [vmem:[#allocation11 + $0x7c] sm:$0xf]
      %v1017 = vunpack.c.l.b16 %v953
      %v1018 = vunpack.c.l.b16 %v954
      %v1019 = vunpack.c.l.b16 %v955
      %v1020 = vunpack.c.l.b16 %v956
      %v1021 = vunpack.c.l.b16 %v957
      %v1022 = vunpack.c.l.b16 %v958
      %v1023 = vunpack.c.l.b16 %v959
      %v1024 = vunpack.c.l.b16 %v960
      %v1025 = vunpack.c.l.b16 %v961
      %v1026 = vunpack.c.l.b16 %v962
      %v1027 = vunpack.c.l.b16 %v963
      %v1028 = vunpack.c.l.b16 %v964
      %v1029 = vunpack.c.l.b16 %v965
      %v1030 = vunpack.c.l.b16 %v966
      %v1031 = vunpack.c.l.b16 %v967
      %v1032 = vunpack.c.l.b16 %v968
      %v1033 = vunpack.c.l.b16 %v969
      %v1034 = vunpack.c.l.b16 %v970
      %v1035 = vunpack.c.l.b16 %v971
      %v1036 = vunpack.c.l.b16 %v972
      %v1037 = vunpack.c.l.b16 %v973
      %v1038 = vunpack.c.l.b16 %v974
      %v1039 = vunpack.c.l.b16 %v975
      %v1040 = vunpack.c.l.b16 %v976
      %v1041 = vunpack.c.l.b16 %v977
      %v1042 = vunpack.c.l.b16 %v978
      %v1043 = vunpack.c.l.b16 %v979
      %v1044 = vunpack.c.l.b16 %v980
      %v1045 = vunpack.c.l.b16 %v981
      %v1046 = vunpack.c.l.b16 %v982
      %v1047 = vunpack.c.l.b16 %v983
      %v1048 = vunpack.c.l.b16 %v984
      %v1049 = vpack.c.b16 %v1018, %v1017
      %v1050 = vpack.c.b16 %v1020, %v1019
      %v1051 = vpack.c.b16 %v1022, %v1021
      %v1052 = vpack.c.b16 %v1024, %v1023
      %v1053 = vpack.c.b16 %v1026, %v1025
      %v1054 = vpack.c.b16 %v1028, %v1027
      %v1055 = vpack.c.b16 %v1030, %v1029
      %v1056 = vpack.c.b16 %v1032, %v1031
      %v1057 = vpack.c.b16 %v1034, %v1033
      %v1058 = vpack.c.b16 %v1036, %v1035
      %v1059 = vpack.c.b16 %v1038, %v1037
      %v1060 = vpack.c.b16 %v1040, %v1039
      %v1061 = vpack.c.b16 %v1042, %v1041
      %v1062 = vpack.c.b16 %v1044, %v1043
      %v1063 = vpack.c.b16 %v1046, %v1045
      %v1064 = vpack.c.b16 %v1048, %v1047
      %1081 = vmatprep.subr.bf16.mxu0 0
      %1082 = vmatpush1.bf16.msra.mxu0 %v1049
      %1083 = vmatprep.subr.bf16.mxu0 0
      %1084 = vmatpush1.bf16.msra.mxu0 %v1050
      %1085 = vmatprep.subr.bf16.mxu0 0
      %1086 = vmatpush1.bf16.msra.mxu0 %v1051
      %1087 = vmatprep.subr.bf16.mxu0 0
      %1088 = vmatpush1.bf16.msra.mxu0 %v1052
      %1089 = vmatprep.subr.bf16.mxu0 0
      %1090 = vmatpush1.bf16.msra.mxu0 %v1053
      %1091 = vmatprep.subr.bf16.mxu0 0
      %1092 = vmatpush1.bf16.msra.mxu0 %v1054
      %1093 = vmatprep.subr.bf16.mxu0 0
      %1094 = vmatpush1.bf16.msra.mxu0 %v1055
      %1095 = vmatprep.subr.bf16.mxu0 0
      %1096 = vmatpush1.bf16.msra.mxu0 %v1056
      %1097 = vmatprep.subr.bf16.mxu0 0
      %1098 = vmatpush1.bf16.msra.mxu0 %v1057
      %1099 = vmatprep.subr.bf16.mxu0 0
      %1100 = vmatpush1.bf16.msra.mxu0 %v1058
      %1101 = vmatprep.subr.bf16.mxu0 0
      %1102 = vmatpush1.bf16.msra.mxu0 %v1059
      %1103 = vmatprep.subr.bf16.mxu0 0
      %1104 = vmatpush1.bf16.msra.mxu0 %v1060
      %1105 = vmatprep.subr.bf16.mxu0 0
      %1106 = vmatpush1.bf16.msra.mxu0 %v1061
      %1107 = vmatprep.subr.bf16.mxu0 0
      %1108 = vmatpush1.bf16.msra.mxu0 %v1062
      %1109 = vmatprep.subr.bf16.mxu0 0
      %1110 = vmatpush1.bf16.msra.mxu0 %v1063
      %1111 = vmatprep.subr.bf16.mxu0 0
      %1112 = vmatpush1.bf16.msra.mxu0 %v1064
      %1113 = vmatprep.mubr.bf16.mxu0 %v826
      %1114 = vmatmul.mubr.bf16.gmra.mrb[0].mxu0 %v825
      %v1115 = vpop.f32.mrb[0].mxu0
      %v1116 = vadd.f32 0.0, %v1115
      %v1117 = vpop.f32.mrb[0].mxu0
      %v1118 = vpop.f32.mrb[0].mxu0
      %v1119 = vadd.f32 0.0, %v1118
      %v1120 = vpop.f32.mrb[0].mxu0
      %1121 = vmatprep.mubr.bf16.mxu0 %v828
      %1122 = vmatmul.mubr.bf16.gmra.mrb[0].mxu0 %v827
      %v1123 = vpop.f32.mrb[0].mxu0
      %v1124 = vadd.f32 0.0, %v1123
      %v1125 = vpop.f32.mrb[0].mxu0
      %v1126 = vpop.f32.mrb[0].mxu0
      %v1127 = vadd.f32 0.0, %v1126
      %v1128 = vpop.f32.mrb[0].mxu0
      %1129 = vmatprep.mubr.bf16.mxu0 %v830
      %1130 = vmatmul.mubr.bf16.gmra.mrb[0].mxu0 %v829
      %v1131 = vpop.f32.mrb[0].mxu0
      %v1132 = vadd.f32 0.0, %v1131
      %v1133 = vpop.f32.mrb[0].mxu0
      %v1134 = vpop.f32.mrb[0].mxu0
      %v1135 = vadd.f32 0.0, %v1134
      %v1136 = vpop.f32.mrb[0].mxu0
      %1137 = vmatprep.mubr.bf16.mxu0 %v832
      %1138 = vmatmul.mubr.bf16.gmra.mrb[0].mxu0 %v831
      %v1139 = vpop.f32.mrb[0].mxu0
      %v1140 = vadd.f32 0.0, %v1139
      %v1141 = vpop.f32.mrb[0].mxu0
      %v1142 = vpop.f32.mrb[0].mxu0
      %v1143 = vadd.f32 0.0, %v1142
      %v1144 = vpop.f32.mrb[0].mxu0
      %1145 = vmatprep.mubr.bf16.mxu0 %v834
      %1146 = vmatmul.mubr.bf16.gmra.mrb[0].mxu0 %v833
      %v1147 = vpop.f32.mrb[0].mxu0
      %v1148 = vadd.f32 0.0, %v1147
      %v1149 = vpop.f32.mrb[0].mxu0
      %v1150 = vpop.f32.mrb[0].mxu0
      %v1151 = vadd.f32 0.0, %v1150
      %v1152 = vpop.f32.mrb[0].mxu0
      %1153 = vmatprep.mubr.bf16.mxu0 %v836
      %1154 = vmatmul.mubr.bf16.gmra.mrb[0].mxu0 %v835
      %v1155 = vpop.f32.mrb[0].mxu0
      %v1156 = vadd.f32 0.0, %v1155
      %v1157 = vpop.f32.mrb[0].mxu0
      %v1158 = vpop.f32.mrb[0].mxu0
      %v1159 = vadd.f32 0.0, %v1158
      %v1160 = vpop.f32.mrb[0].mxu0
      %1161 = vmatprep.mubr.bf16.mxu0 %v838
      %1162 = vmatmul.mubr.bf16.gmra.mrb[0].mxu0 %v837
      %v1163 = vpop.f32.mrb[0].mxu0
      %v1164 = vadd.f32 0.0, %v1163
      %v1165 = vpop.f32.mrb[0].mxu0
      %v1166 = vpop.f32.mrb[0].mxu0
      %v1167 = vadd.f32 0.0, %v1166
      %v1168 = vpop.f32.mrb[0].mxu0
      %1169 = vmatprep.mubr.bf16.mxu0 %v840
      %1170 = vmatmul.mubr.bf16.gmra.mrb[0].mxu0 %v839
      %v1171 = vpop.f32.mrb[0].mxu0
      %v1172 = vadd.f32 0.0, %v1171
      %v1173 = vpop.f32.mrb[0].mxu0
      %v1174 = vpop.f32.mrb[0].mxu0
      %v1175 = vadd.f32 0.0, %v1174
      %v1176 = vpop.f32.mrb[0].mxu0
      %1177 = vdwg.mxu0
      %v1210 = vunpack.c.l.b16 %v921
      %v1211 = vunpack.c.l.b16 %v922
      %v1212 = vunpack.c.l.b16 %v923
      %v1213 = vunpack.c.l.b16 %v924
      %v1214 = vunpack.c.l.b16 %v925
      %v1215 = vunpack.c.l.b16 %v926
      %v1216 = vunpack.c.l.b16 %v927
      %v1217 = vunpack.c.l.b16 %v928
      %v1218 = vunpack.c.l.b16 %v929
      %v1219 = vunpack.c.l.b16 %v930
      %v1220 = vunpack.c.l.b16 %v931
      %v1221 = vunpack.c.l.b16 %v932
      %v1222 = vunpack.c.l.b16 %v933
      %v1223 = vunpack.c.l.b16 %v934
      %v1224 = vunpack.c.l.b16 %v935
      %v1225 = vunpack.c.l.b16 %v936
      %v1226 = vunpack.c.l.b16 %v937
      %v1227 = vunpack.c.l.b16 %v938
      %v1228 = vunpack.c.l.b16 %v939
      %v1229 = vunpack.c.l.b16 %v940
      %v1230 = vunpack.c.l.b16 %v941
      %v1231 = vunpack.c.l.b16 %v942
      %v1232 = vunpack.c.l.b16 %v943
      %v1233 = vunpack.c.l.b16 %v944
      %v1234 = vunpack.c.l.b16 %v945
      %v1235 = vunpack.c.l.b16 %v946
      %v1236 = vunpack.c.l.b16 %v947
      %v1237 = vunpack.c.l.b16 %v948
      %v1238 = vunpack.c.l.b16 %v949
      %v1239 = vunpack.c.l.b16 %v950
      %v1240 = vunpack.c.l.b16 %v951
      %v1241 = vunpack.c.l.b16 %v952
      %v1242 = vpack.c.b16 %v1211, %v1210
      %v1243 = vpack.c.b16 %v1213, %v1212
      %v1244 = vpack.c.b16 %v1215, %v1214
      %v1245 = vpack.c.b16 %v1217, %v1216
      %v1246 = vpack.c.b16 %v1219, %v1218
      %v1247 = vpack.c.b16 %v1221, %v1220
      %v1248 = vpack.c.b16 %v1223, %v1222
      %v1249 = vpack.c.b16 %v1225, %v1224
      %v1250 = vpack.c.b16 %v1227, %v1226
      %v1251 = vpack.c.b16 %v1229, %v1228
      %v1252 = vpack.c.b16 %v1231, %v1230
      %v1253 = vpack.c.b16 %v1233, %v1232
      %v1254 = vpack.c.b16 %v1235, %v1234
      %v1255 = vpack.c.b16 %v1237, %v1236
      %v1256 = vpack.c.b16 %v1239, %v1238
      %v1257 = vpack.c.b16 %v1241, %v1240
      %1274 = vmatprep.subr.bf16.mxu0 0
      %1275 = vmatpush1.bf16.msra.mxu0 %v1242
      %1276 = vmatprep.subr.bf16.mxu0 0
      %1277 = vmatpush1.bf16.msra.mxu0 %v1243
      %1278 = vmatprep.subr.bf16.mxu0 0
      %1279 = vmatpush1.bf16.msra.mxu0 %v1244
      %1280 = vmatprep.subr.bf16.mxu0 0
      %1281 = vmatpush1.bf16.msra.mxu0 %v1245
      %1282 = vmatprep.subr.bf16.mxu0 0
      %1283 = vmatpush1.bf16.msra.mxu0 %v1246
      %1284 = vmatprep.subr.bf16.mxu0 0
      %1285 = vmatpush1.bf16.msra.mxu0 %v1247
      %1286 = vmatprep.subr.bf16.mxu0 0
      %1287 = vmatpush1.bf16.msra.mxu0 %v1248
      %1288 = vmatprep.subr.bf16.mxu0 0
      %1289 = vmatpush1.bf16.msra.mxu0 %v1249
      %1290 = vmatprep.subr.bf16.mxu0 0
      %1291 = vmatpush1.bf16.msra.mxu0 %v1250
      %1292 = vmatprep.subr.bf16.mxu0 0
      %1293 = vmatpush1.bf16.msra.mxu0 %v1251
      %1294 = vmatprep.subr.bf16.mxu0 0
      %1295 = vmatpush1.bf16.msra.mxu0 %v1252
      %1296 = vmatprep.subr.bf16.mxu0 0
      %1297 = vmatpush1.bf16.msra.mxu0 %v1253
      %1298 = vmatprep.subr.bf16.mxu0 0
      %1299 = vmatpush1.bf16.msra.mxu0 %v1254
      %1300 = vmatprep.subr.bf16.mxu0 0
      %1301 = vmatpush1.bf16.msra.mxu0 %v1255
      %1302 = vmatprep.subr.bf16.mxu0 0
      %1303 = vmatpush1.bf16.msra.mxu0 %v1256
      %1304 = vmatprep.subr.bf16.mxu0 0
      %1305 = vmatpush1.bf16.msra.mxu0 %v1257
      %1306 = vmatprep.mubr.bf16.mxu0 %v826
      %1307 = vmatmul.mubr.bf16.gmra.mrb[0].mxu0 %v825
      %v1308 = vpop.f32.mrb[0].mxu0
      %v1309 = vadd.f32 %v1116, %v1308
      %v1310 = vpop.f32.mrb[0].mxu0
      %v1311 = vpop.f32.mrb[0].mxu0
      %v1312 = vadd.f32 %v1119, %v1311
      %v1313 = vpop.f32.mrb[0].mxu0
      %1314 = vmatprep.mubr.bf16.mxu0 %v828
      %1315 = vmatmul.mubr.bf16.gmra.mrb[0].mxu0 %v827
      %v1316 = vpop.f32.mrb[0].mxu0
      %v1317 = vadd.f32 %v1124, %v1316
      %v1318 = vpop.f32.mrb[0].mxu0
      %v1319 = vpop.f32.mrb[0].mxu0
      %v1320 = vadd.f32 %v1127, %v1319
      %v1321 = vpop.f32.mrb[0].mxu0
      %1322 = vmatprep.mubr.bf16.mxu0 %v830
      %1323 = vmatmul.mubr.bf16.gmra.mrb[0].mxu0 %v829
      %v1324 = vpop.f32.mrb[0].mxu0
      %v1325 = vadd.f32 %v1132, %v1324
      %v1326 = vpop.f32.mrb[0].mxu0
      %v1327 = vpop.f32.mrb[0].mxu0
      %v1328 = vadd.f32 %v1135, %v1327
      %v1329 = vpop.f32.mrb[0].mxu0
      %1330 = vmatprep.mubr.bf16.mxu0 %v832
      %1331 = vmatmul.mubr.bf16.gmra.mrb[0].mxu0 %v831
      %v1332 = vpop.f32.mrb[0].mxu0
      %v1333 = vadd.f32 %v1140, %v1332
      %v1334 = vpop.f32.mrb[0].mxu0
      %v1335 = vpop.f32.mrb[0].mxu0
      %v1336 = vadd.f32 %v1143, %v1335
      %v1337 = vpop.f32.mrb[0].mxu0
      %1338 = vmatprep.mubr.bf16.mxu0 %v834
      %1339 = vmatmul.mubr.bf16.gmra.mrb[0].mxu0 %v833
      %v1340 = vpop.f32.mrb[0].mxu0
      %v1341 = vadd.f32 %v1148, %v1340
      %v1342 = vpop.f32.mrb[0].mxu0
      %v1343 = vpop.f32.mrb[0].mxu0
      %v1344 = vadd.f32 %v1151, %v1343
      %v1345 = vpop.f32.mrb[0].mxu0
      %1346 = vmatprep.mubr.bf16.mxu0 %v836
      %1347 = vmatmul.mubr.bf16.gmra.mrb[0].mxu0 %v835
      %v1348 = vpop.f32.mrb[0].mxu0
      %v1349 = vadd.f32 %v1156, %v1348
      %v1350 = vpop.f32.mrb[0].mxu0
      %v1351 = vpop.f32.mrb[0].mxu0
      %v1352 = vadd.f32 %v1159, %v1351
      %v1353 = vpop.f32.mrb[0].mxu0
      %1354 = vmatprep.mubr.bf16.mxu0 %v838
      %1355 = vmatmul.mubr.bf16.gmra.mrb[0].mxu0 %v837
      %v1356 = vpop.f32.mrb[0].mxu0
      %v1357 = vadd.f32 %v1164, %v1356
      %v1358 = vpop.f32.mrb[0].mxu0
      %v1359 = vpop.f32.mrb[0].mxu0
      %v1360 = vadd.f32 %v1167, %v1359
      %v1361 = vpop.f32.mrb[0].mxu0
      %1362 = vmatprep.mubr.bf16.mxu0 %v840
      %1363 = vmatmul.mubr.bf16.gmra.mrb[0].mxu0 %v839
      %v1364 = vpop.f32.mrb[0].mxu0
      %v1365 = vadd.f32 %v1172, %v1364
      %v1366 = vpop.f32.mrb[0].mxu0
      %v1367 = vpop.f32.mrb[0].mxu0
      %v1368 = vadd.f32 %v1175, %v1367
      %v1369 = vpop.f32.mrb[0].mxu0
      %1370 = vdwg.mxu0
      %1371 = vmatprep.subr.bf16.mxu0 0
      %1372 = vmatpush1.bf16.msra.mxu0 %v1242
      %1373 = vmatprep.subr.bf16.mxu0 0
      %1374 = vmatpush1.bf16.msra.mxu0 %v1243
      %1375 = vmatprep.subr.bf16.mxu0 0
      %1376 = vmatpush1.bf16.msra.mxu0 %v1244
      %1377 = vmatprep.subr.bf16.mxu0 0
      %1378 = vmatpush1.bf16.msra.mxu0 %v1245
      %1379 = vmatprep.subr.bf16.mxu0 0
      %1380 = vmatpush1.bf16.msra.mxu0 %v1246
      %1381 = vmatprep.subr.bf16.mxu0 0
      %1382 = vmatpush1.bf16.msra.mxu0 %v1247
      %1383 = vmatprep.subr.bf16.mxu0 0
      %1384 = vmatpush1.bf16.msra.mxu0 %v1248
      %1385 = vmatprep.subr.bf16.mxu0 0
      %1386 = vmatpush1.bf16.msra.mxu0 %v1249
      %1387 = vmatprep.subr.bf16.mxu0 0
      %1388 = vmatpush1.bf16.msra.mxu0 %v1250
      %1389 = vmatprep.subr.bf16.mxu0 0
      %1390 = vmatpush1.bf16.msra.mxu0 %v1251
      %1391 = vmatprep.subr.bf16.mxu0 0
      %1392 = vmatpush1.bf16.msra.mxu0 %v1252
      %1393 = vmatprep.subr.bf16.mxu0 0
      %1394 = vmatpush1.bf16.msra.mxu0 %v1253
      %1395 = vmatprep.subr.bf16.mxu0 0
      %1396 = vmatpush1.bf16.msra.mxu0 %v1254
      %1397 = vmatprep.subr.bf16.mxu0 0
      %1398 = vmatpush1.bf16.msra.mxu0 %v1255
      %1399 = vmatprep.subr.bf16.mxu0 0
      %1400 = vmatpush1.bf16.msra.mxu0 %v1256
      %1401 = vmatprep.subr.bf16.mxu0 0
      %1402 = vmatpush1.bf16.msra.mxu0 %v1257
      %1403 = vmatprep.mubr.bf16.mxu0 %v906
      %1404 = vmatmul.mubr.bf16.gmra.mrb[0].mxu0 %v905
      %v1405 = vpop.f32.mrb[0].mxu0
      %v1406 = vadd.f32 0.0, %v1405
      %v1407 = vpop.f32.mrb[0].mxu0
      %v1408 = vpop.f32.mrb[0].mxu0
      %v1409 = vadd.f32 0.0, %v1408
      %v1410 = vpop.f32.mrb[0].mxu0
      %1411 = vmatprep.mubr.bf16.mxu0 %v908
      %1412 = vmatmul.mubr.bf16.gmra.mrb[0].mxu0 %v907
      %v1413 = vpop.f32.mrb[0].mxu0
      %v1414 = vadd.f32 0.0, %v1413
      %v1415 = vpop.f32.mrb[0].mxu0
      %v1416 = vpop.f32.mrb[0].mxu0
      %v1417 = vadd.f32 0.0, %v1416
      %v1418 = vpop.f32.mrb[0].mxu0
      %1419 = vmatprep.mubr.bf16.mxu0 %v910
      %1420 = vmatmul.mubr.bf16.gmra.mrb[0].mxu0 %v909
      %v1421 = vpop.f32.mrb[0].mxu0
      %v1422 = vadd.f32 0.0, %v1421
      %v1423 = vpop.f32.mrb[0].mxu0
      %v1424 = vpop.f32.mrb[0].mxu0
      %v1425 = vadd.f32 0.0, %v1424
      %v1426 = vpop.f32.mrb[0].mxu0
      %1427 = vmatprep.mubr.bf16.mxu0 %v912
      %1428 = vmatmul.mubr.bf16.gmra.mrb[0].mxu0 %v911
      %v1429 = vpop.f32.mrb[0].mxu0
      %v1430 = vadd.f32 0.0, %v1429
      %v1431 = vpop.f32.mrb[0].mxu0
      %v1432 = vpop.f32.mrb[0].mxu0
      %v1433 = vadd.f32 0.0, %v1432
      %v1434 = vpop.f32.mrb[0].mxu0
      %1435 = vmatprep.mubr.bf16.mxu0 %v914
      %1436 = vmatmul.mubr.bf16.gmra.mrb[0].mxu0 %v913
      %v1437 = vpop.f32.mrb[0].mxu0
      %v1438 = vadd.f32 0.0, %v1437
      %v1439 = vpop.f32.mrb[0].mxu0
      %v1440 = vpop.f32.mrb[0].mxu0
      %v1441 = vadd.f32 0.0, %v1440
      %v1442 = vpop.f32.mrb[0].mxu0
      %1443 = vmatprep.mubr.bf16.mxu0 %v916
      %1444 = vmatmul.mubr.bf16.gmra.mrb[0].mxu0 %v915
      %v1445 = vpop.f32.mrb[0].mxu0
      %v1446 = vadd.f32 0.0, %v1445
      %v1447 = vpop.f32.mrb[0].mxu0
      %v1448 = vpop.f32.mrb[0].mxu0
      %v1449 = vadd.f32 0.0, %v1448
      %v1450 = vpop.f32.mrb[0].mxu0
      %1451 = vmatprep.mubr.bf16.mxu0 %v918
      %1452 = vmatmul.mubr.bf16.gmra.mrb[0].mxu0 %v917
      %v1453 = vpop.f32.mrb[0].mxu0
      %v1454 = vadd.f32 0.0, %v1453
      %v1455 = vpop.f32.mrb[0].mxu0
      %v1456 = vpop.f32.mrb[0].mxu0
      %v1457 = vadd.f32 0.0, %v1456
      %v1458 = vpop.f32.mrb[0].mxu0
      %1459 = vmatprep.mubr.bf16.mxu0 %v920
      %1460 = vmatmul.mubr.bf16.gmra.mrb[0].mxu0 %v919
      %v1461 = vpop.f32.mrb[0].mxu0
      %v1462 = vadd.f32 0.0, %v1461
      %v1463 = vpop.f32.mrb[0].mxu0
      %v1464 = vpop.f32.mrb[0].mxu0
      %v1465 = vadd.f32 0.0, %v1464
      %v1466 = vpop.f32.mrb[0].mxu0
      %1467 = vdwg.mxu0
      %v1468 = vadd.f32 %v1309, %v1406
      %v1469 = vadd.f32 %v1312, %v1409
      %v1470 = vadd.f32 %v1317, %v1414
      %v1471 = vadd.f32 %v1320, %v1417
      %v1472 = vadd.f32 %v1325, %v1422
      %v1473 = vadd.f32 %v1328, %v1425
      %v1474 = vadd.f32 %v1333, %v1430
      %v1475 = vadd.f32 %v1336, %v1433
      %v1476 = vadd.f32 %v1341, %v1438
      %v1477 = vadd.f32 %v1344, %v1441
      %v1478 = vadd.f32 %v1349, %v1446
      %v1479 = vadd.f32 %v1352, %v1449
      %v1480 = vadd.f32 %v1357, %v1454
      %v1481 = vadd.f32 %v1360, %v1457
      %v1482 = vadd.f32 %v1365, %v1462
      %v1483 = vadd.f32 %v1368, %v1465
      %v1484 = vld [vmem:[%s5] sm:$0x1]
      %v1486 = vlaneseq
      %v1487 = vshrl.u32 %v1486, 7
      %v1488 = vsub.s32 0, %v1487
      %v1489 = vrot.slane %v1484, %v1488
      %v1491 = vadd.f32 %v1468, %v1489
      %v1492 = vadd.f32 %v1469, %v1489
      %v1493 = vadd.f32 %v1470, %v1489
      %v1494 = vadd.f32 %v1471, %v1489
      %v1495 = vadd.f32 %v1472, %v1489
      %v1496 = vadd.f32 %v1473, %v1489
      %v1497 = vadd.f32 %v1474, %v1489
      %v1498 = vadd.f32 %v1475, %v1489
      %v1499 = vadd.f32 %v1476, %v1489
      %v1500 = vadd.f32 %v1477, %v1489
      %v1501 = vadd.f32 %v1478, %v1489
      %v1502 = vadd.f32 %v1479, %v1489
      %v1503 = vadd.f32 %v1480, %v1489
      %v1504 = vadd.f32 %v1481, %v1489
      %v1505 = vadd.f32 %v1482, %v1489
      %v1506 = vadd.f32 %v1483, %v1489
      %v1507 = vmax.f32 %v1491, 0.0
      %v1508 = vmax.f32 %v1492, 0.0
      %v1509 = vmax.f32 %v1493, 0.0
      %v1510 = vmax.f32 %v1494, 0.0
      %v1511 = vmax.f32 %v1495, 0.0
      %v1512 = vmax.f32 %v1496, 0.0
      %v1513 = vmax.f32 %v1497, 0.0
      %v1514 = vmax.f32 %v1498, 0.0
      %v1515 = vmax.f32 %v1499, 0.0
      %v1516 = vmax.f32 %v1500, 0.0
      %v1517 = vmax.f32 %v1501, 0.0
      %v1518 = vmax.f32 %v1502, 0.0
      %v1519 = vmax.f32 %v1503, 0.0
      %v1520 = vmax.f32 %v1504, 0.0
      %v1521 = vmax.f32 %v1505, 0.0
      %v1522 = vmax.f32 %v1506, 0.0
      %1523 = vst [vmem:[#allocation12] sm:$0xff] %v1507
      %1524 = vst [vmem:[#allocation12 + $0x8] sm:$0xff] %v1508
      %1525 = vst [vmem:[#allocation12 + $0x10] sm:$0xff] %v1509
      %1526 = vst [vmem:[#allocation12 + $0x18] sm:$0xff] %v1510
      %1527 = vst [vmem:[#allocation12 + $0x20] sm:$0xff] %v1511
      %1528 = vst [vmem:[#allocation12 + $0x28] sm:$0xff] %v1512
      %1529 = vst [vmem:[#allocation12 + $0x30] sm:$0xff] %v1513
      %1530 = vst [vmem:[#allocation12 + $0x38] sm:$0xff] %v1514
      %1531 = vst [vmem:[#allocation12 + $0x40] sm:$0xff] %v1515
      %1532 = vst [vmem:[#allocation12 + $0x48] sm:$0xff] %v1516
      %1533 = vst [vmem:[#allocation12 + $0x50] sm:$0xff] %v1517
      %1534 = vst [vmem:[#allocation12 + $0x58] sm:$0xff] %v1518
      %1535 = vst [vmem:[#allocation12 + $0x60] sm:$0xff] %v1519
      %1536 = vst [vmem:[#allocation12 + $0x68] sm:$0xff] %v1520
      %1537 = vst [vmem:[#allocation12 + $0x70] sm:$0xff] %v1521
      %1538 = vst [vmem:[#allocation12 + $0x78] sm:$0xff] %v1522
    $region57: #{tpu_custom_call.1} parent=1 // pred_fallthru
      _
    // Predicated region
    $region58: #{tpu_custom_call.1} parent=1 // pred_check
      _
    $region59: #{tpu_custom_call.1} parent=1 // pred_check_branch
      %1540 = sbr.rel (0) target = $region61
    $region60: #{tpu_custom_call.1} parent=1 // pred_region
      %s1542 = ssub.s32 2048, 2048
      %1543 = vsyncadd [#allocation5], %s1542
      %s1544 = sshll.u32 [#allocation12], 4
      %s1545 = int_to_ptr.vmem [resolvable:$true] %s1544
      %1550 = dma.vmem_to_hbm [thread:$0]  %s1545, 2048, %s6, [#allocation5], 128, 128, 8
    $region61: #{tpu_custom_call.1} parent=1 // pred_fallthru
      _
    // Predicated region
    $region62: #{tpu_custom_call.1} parent=1 // pred_check
      _
    $region63: #{tpu_custom_call.1} parent=1 // pred_check_branch
      %1552 = sbr.rel (0) target = $region65
    $region64: #{tpu_custom_call.1} parent=1 // pred_region
      %1553 = dma.done [#allocation5], 2048
    $region65: #{tpu_custom_call.1} parent=1 // pred_fallthru
      _
    %1554 = vsyncpa [#allocation4], 1
    %1555 = vsyncpa [#allocation7], 1
    %1556 = vsyncpa [#allocation10], 1
    %1557 = vsyncpa [#allocation5], 1

</llo_original>
